<compile_context>
chip_gen: v7x
topology: tpu7x:2x2x1
jax: 0.10.0
libtpu: 0.0.40
codegen_flags: <defaults>
</compile_context>

<pallas_src>
import functools

import jax
import jax.numpy as jnp
from jax.experimental import pallas as pl
from jax.experimental.pallas import tpu as pltpu  # noqa: F401  (kept for parity / future scratch use)


# ---------------------------------------------------------------------------
# Fused kernel
# ---------------------------------------------------------------------------
def _lstm_cell(gates, c, H):
    """PyTorch LSTM cell update from pre-activation gates in (i, f, g, o) order.

    The g-gate pre-activations arrive pre-scaled by 2 (folded into the weights),
    so a single sigmoid over the full (B, 4H) vector yields every gate:
    tanh(x) = 2*sigmoid(2x) - 1.
    """
    s = jax.nn.sigmoid(gates)                 # one EUP pass over the 4H lanes
    i = s[:, 0 * H:1 * H]
    f = s[:, 1 * H:2 * H]
    g = 2.0 * s[:, 2 * H:3 * H] - 1.0         # == tanh(original g pre-activation)
    o = s[:, 3 * H:4 * H]
    c_new = f * c + i * g
    h_new = o * jnp.tanh(c_new)
    return h_new, c_new


def vrae_fused_kernel(x2d_ref, slab_a_ref, slab_b_ref, out_ref, *, T, B, F, H, L):
    f32 = jnp.float32
    bf16 = jnp.bfloat16

    # ---- slab A (bf16): serial-chain recurrence weights, gate dim on lanes ----
    enc_whh = slab_a_ref[0:H, :]                    # (H, 4H)
    dec_whh = slab_a_ref[H:2 * H, :]                # (H, 4H)

    # ---- slab B (f32): biases, input projection, small linears (static rows) --
    enc_b = slab_b_ref[0:1, :]                      # (1, 4H)
    dec_b = slab_b_ref[1:2, :]                      # (1, 4H)
    b_mean = slab_b_ref[2:3, 0:L]                   # (1, L)
    b_l2h = slab_b_ref[3:4, 0:H]                    # (1, H)
    w_ho = slab_b_ref[4:5, 0:H]                     # (1, H)   hidden_to_output row
    b_ho = slab_b_ref[4:5, H:H + 1]                 # (1, 1)
    enc_wih = slab_b_ref[5:5 + F, :]                # (F, 4H)
    w_mean = slab_b_ref[5 + F:5 + F + H, 0:L]       # (H, L)
    w_l2h = slab_b_ref[5 + F + H:5 + F + H + L, 0:H]  # (L, H)

    # ---- Encoder: input projection for ALL timesteps in one matmul (off-chain)
    xc_all = (jnp.dot(x2d_ref[...], enc_wih, preferred_element_type=f32)
              + enc_b)                              # (T*B, 4H), rows t-major

    h = jnp.zeros((B, H), f32)
    c = jnp.zeros((B, H), f32)
    # T is small & static -> fully unrolled serial recurrence (values in vregs).
    for t in range(T):
        gates = (xc_all[t * B:(t + 1) * B, :]       # full (8,128) tile slice
                 + jnp.dot(h.astype(bf16), enc_whh, preferred_element_type=f32))
        h, c = _lstm_cell(gates, c, H)
    h_end = h                                       # (B, H)

    # ---- Lambda (eval mode): latent = hidden_to_mean(h_end) -------------------
    latent = jnp.dot(h_end, w_mean, preferred_element_type=f32) + b_mean  # (B, L)
    # TODO(synk): training-mode reparameterization (eps*std + mean) needs a PRNG
    # plumbed in; this reproduces the eval path of Lambda (logvar unused there).

    # ---- Decoder: h0 = latent_to_hidden(latent), c0 = 0 -----------------------
    h = jnp.dot(latent, w_l2h, preferred_element_type=f32) + b_l2h        # (B, H)
    c = jnp.zeros((B, H), f32)

    # Decoder inputs are identically zero in the PyTorch module
    # (Decoder.decoder_inputs), so W_ih @ x_t == 0; only the combined bias remains.
    out_cols = []
    for t in range(T):
        gates = jnp.dot(h.astype(bf16), dec_whh, preferred_element_type=f32) + dec_b
        h, c = _lstm_cell(gates, c, H)
        # hidden_to_output with output_size=1: VPU multiply + lane reduce instead
        # of a degenerate 1-column MXU matmul. Not on the recurrence data path.
        out_cols.append(jnp.sum(h * w_ho, axis=-1, keepdims=True) + b_ho)  # (B,1)

    out_bt = jnp.concatenate(out_cols, axis=1)      # (B, T): lane t = timestep t

    # ---- single lane-dense packed output block --------------------------------
    pad_w = out_ref.shape[1] - (T + L)
    packed = jnp.concatenate(
        [out_bt, latent, jnp.zeros((B, pad_w), f32)], axis=1)  # (B, 128)
    out_ref[...] = packed.astype(out_ref.dtype)


# ---------------------------------------------------------------------------
# Wrappers
# ---------------------------------------------------------------------------
def prepare_params(p):
    """One-time transposes, bias folds, tanh-fold (x2 g-gate) and slab packing."""
    F = p["enc_w_ih"].shape[1]
    H = p["enc_w_hh"].shape[1]
    L = p["w_mean"].shape[0]
    O = p["w_ho"].shape[0]
    G = 4 * H
    assert O == 1  # TODO(synk): output_size > 1 needs the matmul hidden_to_output path.

    def fold_g(a):
        # tanh(x) = 2*sigmoid(2x) - 1: fold the 2x into the g-gate columns/lanes.
        return a.at[..., 2 * H:3 * H].multiply(2.0)

    enc_wih_t = fold_g(p["enc_w_ih"].T)                        # (F, 4H)
    enc_whh_t = fold_g(p["enc_w_hh"].T)                        # (H, 4H)
    enc_b = fold_g((p["enc_b_ih"] + p["enc_b_hh"])[None, :])   # (1, 4H)
    dec_whh_t = fold_g(p["dec_w_hh"].T)                        # (H, 4H)
    dec_b = fold_g((p["dec_b_ih"] + p["dec_b_hh"])[None, :])   # (1, 4H)
    # decoder W_ih multiplies identically-zero decoder inputs -> dropped entirely.
    # hidden_to_logvar is not needed on the eval forward path -> dropped.

    # Slab A (bf16): only the serial-chain recurrence matrices.
    slab_a = jnp.concatenate([enc_whh_t, dec_whh_t], axis=0).astype(jnp.bfloat16)

    def pad_lanes(a):
        return jnp.pad(a, ((0, 0), (0, G - a.shape[1])))

    w_ho_b = jnp.concatenate([p["w_ho"], p["b_ho"][None, :]], axis=1)  # (1, H+1)
    slab_b = jnp.concatenate([
        enc_b,                                # row 0
        dec_b,                                # row 1
        pad_lanes(p["b_mean"][None, :]),      # row 2
        pad_lanes(p["b_l2h"][None, :]),       # row 3
        pad_lanes(w_ho_b),                    # row 4  (w_ho lanes 0:H, b_ho lane H)
        enc_wih_t,                            # rows 5       : 5+F
        pad_lanes(p["w_mean"].T),             # rows 5+F     : 5+F+H
        pad_lanes(p["w_l2h"].T),              # rows 5+F+H   : 5+F+H+L
    ], axis=0).astype(jnp.float32)
    pad_rows = (-slab_b.shape[0]) % 8
    if pad_rows:
        slab_b = jnp.pad(slab_b, ((0, pad_rows), (0, 0)))

    return {"slab_a": slab_a, "slab_b": slab_b}, (F, H, L, O)


def vrae_forward(x, kp, *, dims):
    """Full VRAE forward (eval mode). x: (T, B, F). Returns (x_decoded, latent)."""
    T, B, _ = x.shape
    F, H, L, O = dims
    assert O == 1

    B_pad = max(8, ((B + 7) // 8) * 8)           # pad batch to a full sublane tile
    x_p = jnp.pad(x, ((0, 0), (0, B_pad - B), (0, 0)))
    x2d = x_p.reshape(T * B_pad, F)              # free row-major reshape, stays f32

    pack_w = 128                                 # one lane tile for the fused output
    assert T + L <= pack_w

    packed = pl.pallas_call(
        functools.partial(vrae_fused_kernel, T=T, B=B_pad, F=F, H=H, L=L),
        out_shape=jax.ShapeDtypeStruct((B_pad, pack_w), jnp.float32),
    )(x2d, kp["slab_a"], kp["slab_b"])

    x_decoded = packed[:B, 0:T].T[:, :, None].astype(x.dtype)   # (T, B, 1)
    latent = packed[:B, T:T + L].astype(x.dtype)                # (B, L)
    # TODO(synk): hidden_layer_depth > 1 (stacked LSTM) not implemented; default is 1.
    return x_decoded, latent


# ---------------------------------------------------------------------------
# Pure-JAX reference (for correctness check only; full f32)
# ---------------------------------------------------------------------------
def _lstm_step_ref(h, c, x_t, w_ih, w_hh, b_ih, b_hh):
    gates = x_t @ w_ih.T + h @ w_hh.T + b_ih + b_hh
    H = h.shape[-1]
    i = jax.nn.sigmoid(gates[:, 0 * H:1 * H])
    f = jax.nn.sigmoid(gates[:, 1 * H:2 * H])
    g = jnp.tanh(gates[:, 2 * H:3 * H])
    o = jax.nn.sigmoid(gates[:, 3 * H:4 * H])
    c = f * c + i * g
    h = o * jnp.tanh(c)
    return h, c


def vrae_forward_ref(x, p):
    T, B, F = x.shape
    H = p["enc_w_hh"].shape[1]
    h = jnp.zeros((B, H), jnp.float32)
    c = jnp.zeros((B, H), jnp.float32)

    def enc_step(carry, x_t):
        h, c = carry
        h, c = _lstm_step_ref(h, c, x_t, p["enc_w_ih"], p["enc_w_hh"],
                              p["enc_b_ih"], p["enc_b_hh"])
        return (h, c), None

    (h_end, _), _ = jax.lax.scan(enc_step, (h, c), x)
    latent = h_end @ p["w_mean"].T + p["b_mean"]
    h0 = latent @ p["w_l2h"].T + p["b_l2h"]
    c0 = jnp.zeros_like(h0)
    zero_in = jnp.zeros((T, B, 1), jnp.float32)

    def dec_step(carry, x_t):
        h, c = carry
        h, c = _lstm_step_ref(h, c, x_t, p["dec_w_ih"], p["dec_w_hh"],
                              p["dec_b_ih"], p["dec_b_hh"])
        out = h @ p["w_ho"].T + p["b_ho"]
        return (h, c), out

    _, outs = jax.lax.scan(dec_step, (h0, c0), zero_in)
    return outs, latent


# ---------------------------------------------------------------------------
# Deterministic parameter init (synthetic; shapes from module __init__)
# ---------------------------------------------------------------------------
def init_params(key, F, H, L, O):
    ks = jax.random.split(key, 16)
    u = lambda k, shape, s: jax.random.uniform(k, shape, jnp.float32, -s, s)
    sH = 1.0 / jnp.sqrt(H)
    return {
        # encoder LSTM(F -> H)
        "enc_w_ih": u(ks[0], (4 * H, F), sH),
        "enc_w_hh": u(ks[1], (4 * H, H), sH),
        "enc_b_ih": u(ks[2], (4 * H,), sH),
        "enc_b_hh": u(ks[3], (4 * H,), sH),
        # Lambda linears (H -> L); logvar kept for module parity (unused in eval fwd)
        "w_mean": u(ks[4], (L, H), 0.2),
        "b_mean": u(ks[5], (L,), 0.2),
        "w_logvar": u(ks[6], (L, H), 0.2),
        "b_logvar": u(ks[7], (L,), 0.2),
        # latent_to_hidden (L -> H)
        "w_l2h": u(ks[8], (H, L), 0.2),
        "b_l2h": u(ks[9], (H,), 0.2),
        # decoder LSTM(1 -> H)
        "dec_w_ih": u(ks[10], (4 * H, 1), sH),
        "dec_w_hh": u(ks[11], (4 * H, H), sH),
        "dec_b_ih": u(ks[12], (4 * H,), sH),
        "dec_b_hh": u(ks[13], (4 * H,), sH),
        # hidden_to_output (H -> O)
        "w_ho": u(ks[14], (O, H), 0.2),
        "b_ho": u(ks[15], (O,), 0.2),
    }


if __name__ == "__main__":
    T, B, F = 8, 2, 4          # sequence_length, batch_size, number_of_features
    H, L, O = 32, 16, 1        # hidden_size, latent_length, output_size

    key = jax.random.PRNGKey(0)
    kx, kp_key = jax.random.split(key)
    x = jax.random.normal(kx, (T, B, F), jnp.float32)
    params = init_params(kp_key, F, H, L, O)
    kparams, dims = prepare_params(params)   # one-time packing / folds

    fwd = jax.jit(functools.partial(vrae_forward, dims=dims))
    x_decoded, latent = fwd(x, kparams)
    jax.block_until_ready((x_decoded, latent))

    x_ref, lat_ref = jax.jit(vrae_forward_ref)(x, params)
    assert x_decoded.shape == (T, B, O) and latent.shape == (B, L)
    # bf16 recurrence weights on the MXU -> loosened tolerance vs the f32 reference.
    assert jnp.allclose(x_decoded, x_ref, atol=3e-2, rtol=3e-2)
    assert jnp.allclose(latent, lat_ref, atol=3e-2, rtol=3e-2)

    print("KERNEL_OK")
</pallas_src>

<mosaic_0001>
module attributes {stable_mosaic.version = 11 : i64} {
  func.func @vrae_fused_kernel(%arg0: memref<64x4xf32, #tpu.memory_space<vmem>>, %arg1: memref<64x128xbf16, #tpu.memory_space<vmem>>, %arg2: memref<64x128xf32, #tpu.memory_space<vmem>>, %arg3: memref<8x128xf32, #tpu.memory_space<vmem>>) attributes {dimension_semantics = [], scalar_prefetch = 0 : i64, scratch_operands = 0 : i64, tpu.core_type = #tpu.core_type<tc>} {
    %c0 = arith.constant 0 : index
    %c0_0 = arith.constant 0 : index
    %0 = vector.load %arg1[%c0, %c0_0] : memref<64x128xbf16, #tpu.memory_space<vmem>>, vector<32x128xbf16>
    %c32 = arith.constant 32 : index
    %c0_1 = arith.constant 0 : index
    %1 = vector.load %arg1[%c32, %c0_1] : memref<64x128xbf16, #tpu.memory_space<vmem>>, vector<32x128xbf16>
    %c0_2 = arith.constant 0 : index
    %c0_3 = arith.constant 0 : index
    %2 = vector.load %arg2[%c0_2, %c0_3] : memref<64x128xf32, #tpu.memory_space<vmem>>, vector<1x128xf32>
    %c1 = arith.constant 1 : index
    %c0_4 = arith.constant 0 : index
    %3 = vector.load %arg2[%c1, %c0_4] : memref<64x128xf32, #tpu.memory_space<vmem>>, vector<1x128xf32>
    %c2 = arith.constant 2 : index
    %c0_5 = arith.constant 0 : index
    %4 = vector.load %arg2[%c2, %c0_5] : memref<64x128xf32, #tpu.memory_space<vmem>>, vector<1x16xf32>
    %c3 = arith.constant 3 : index
    %c0_6 = arith.constant 0 : index
    %5 = vector.load %arg2[%c3, %c0_6] : memref<64x128xf32, #tpu.memory_space<vmem>>, vector<1x32xf32>
    %c4 = arith.constant 4 : index
    %c0_7 = arith.constant 0 : index
    %6 = vector.load %arg2[%c4, %c0_7] : memref<64x128xf32, #tpu.memory_space<vmem>>, vector<1x32xf32>
    %c4_8 = arith.constant 4 : index
    %c32_9 = arith.constant 32 : index
    %7 = vector.load %arg2[%c4_8, %c32_9] : memref<64x128xf32, #tpu.memory_space<vmem>>, vector<1x1xf32>
    %c5 = arith.constant 5 : index
    %c0_10 = arith.constant 0 : index
    %8 = vector.load %arg2[%c5, %c0_10] : memref<64x128xf32, #tpu.memory_space<vmem>>, vector<4x128xf32>
    %c9 = arith.constant 9 : index
    %c0_11 = arith.constant 0 : index
    %9 = vector.load %arg2[%c9, %c0_11] : memref<64x128xf32, #tpu.memory_space<vmem>>, vector<32x16xf32>
    %c41 = arith.constant 41 : index
    %c0_12 = arith.constant 0 : index
    %10 = vector.load %arg2[%c41, %c0_12] : memref<64x128xf32, #tpu.memory_space<vmem>>, vector<16x32xf32>
    %c0_13 = arith.constant 0 : index
    %c0_14 = arith.constant 0 : index
    %11 = vector.load %arg0[%c0_13, %c0_14] : memref<64x4xf32, #tpu.memory_space<vmem>>, vector<64x4xf32>
    %cst = arith.constant dense<0.000000e+00> : vector<64x128xf32>
    %12 = tpu.matmul %11, %8, %cst {dimension_numbers = #tpu.dot_dimension_numbers<[1], [0], [0], [1], [0, 0, 1, 1], [], []>} : vector<64x4xf32>, vector<4x128xf32>, vector<64x128xf32> -> vector<64x128xf32>
    %13 = vector.broadcast %2 : vector<1x128xf32> to vector<64x128xf32>
    %14 = arith.addf %12, %13 : vector<64x128xf32>
    %cst_15 = arith.constant 0.000000e+00 : f32
    %15 = vector.broadcast %cst_15 : f32 to vector<8x32xf32>
    %cst_16 = arith.constant 0.000000e+00 : f32
    %16 = vector.broadcast %cst_16 : f32 to vector<8x32xf32>
    %17 = vector.extract_strided_slice %14 {offsets = [0, 0], sizes = [8, 128], strides = [1, 1]} : vector<64x128xf32> to vector<8x128xf32>
    %18 = arith.truncf %15 : vector<8x32xf32> to vector<8x32xbf16>
    %cst_17 = arith.constant dense<0.000000e+00> : vector<8x128xf32>
    %19 = tpu.matmul %18, %0, %cst_17 {dimension_numbers = #tpu.dot_dimension_numbers<[1], [0], [0], [1], [0, 0, 1, 1], [], []>} : vector<8x32xbf16>, vector<32x128xbf16>, vector<8x128xf32> -> vector<8x128xf32>
    %20 = arith.addf %17, %19 : vector<8x128xf32>
    %21 = arith.negf %20 : vector<8x128xf32>
    %22 = math.exp %21 : vector<8x128xf32>
    %cst_18 = arith.constant 1.000000e+00 : f32
    %23 = vector.broadcast %cst_18 : f32 to vector<8x128xf32>
    %24 = arith.addf %23, %22 : vector<8x128xf32>
    %25 = arith.divf %23, %24 : vector<8x128xf32>
    %26 = vector.extract_strided_slice %25 {offsets = [0, 0], sizes = [8, 32], strides = [1, 1]} : vector<8x128xf32> to vector<8x32xf32>
    %27 = vector.extract_strided_slice %25 {offsets = [0, 32], sizes = [8, 32], strides = [1, 1]} : vector<8x128xf32> to vector<8x32xf32>
    %28 = vector.extract_strided_slice %25 {offsets = [0, 64], sizes = [8, 32], strides = [1, 1]} : vector<8x128xf32> to vector<8x32xf32>
    %cst_19 = arith.constant 2.000000e+00 : f32
    %29 = vector.broadcast %cst_19 : f32 to vector<8x32xf32>
    %30 = arith.mulf %29, %28 : vector<8x32xf32>
    %cst_20 = arith.constant 1.000000e+00 : f32
    %31 = vector.broadcast %cst_20 : f32 to vector<8x32xf32>
    %32 = arith.subf %30, %31 : vector<8x32xf32>
    %33 = vector.extract_strided_slice %25 {offsets = [0, 96], sizes = [8, 32], strides = [1, 1]} : vector<8x128xf32> to vector<8x32xf32>
    %34 = arith.mulf %27, %16 : vector<8x32xf32>
    %35 = arith.mulf %26, %32 : vector<8x32xf32>
    %36 = arith.addf %34, %35 : vector<8x32xf32>
    %37 = math.tanh %36 : vector<8x32xf32>
    %38 = arith.mulf %33, %37 : vector<8x32xf32>
    %39 = vector.extract_strided_slice %14 {offsets = [8, 0], sizes = [8, 128], strides = [1, 1]} : vector<64x128xf32> to vector<8x128xf32>
    %40 = arith.truncf %38 : vector<8x32xf32> to vector<8x32xbf16>
    %cst_21 = arith.constant dense<0.000000e+00> : vector<8x128xf32>
    %41 = tpu.matmul %40, %0, %cst_21 {dimension_numbers = #tpu.dot_dimension_numbers<[1], [0], [0], [1], [0, 0, 1, 1], [], []>} : vector<8x32xbf16>, vector<32x128xbf16>, vector<8x128xf32> -> vector<8x128xf32>
    %42 = arith.addf %39, %41 : vector<8x128xf32>
    %43 = arith.negf %42 : vector<8x128xf32>
    %44 = math.exp %43 : vector<8x128xf32>
    %cst_22 = arith.constant 1.000000e+00 : f32
    %45 = vector.broadcast %cst_22 : f32 to vector<8x128xf32>
    %46 = arith.addf %45, %44 : vector<8x128xf32>
    %47 = arith.divf %45, %46 : vector<8x128xf32>
    %48 = vector.extract_strided_slice %47 {offsets = [0, 0], sizes = [8, 32], strides = [1, 1]} : vector<8x128xf32> to vector<8x32xf32>
    %49 = vector.extract_strided_slice %47 {offsets = [0, 32], sizes = [8, 32], strides = [1, 1]} : vector<8x128xf32> to vector<8x32xf32>
    %50 = vector.extract_strided_slice %47 {offsets = [0, 64], sizes = [8, 32], strides = [1, 1]} : vector<8x128xf32> to vector<8x32xf32>
    %cst_23 = arith.constant 2.000000e+00 : f32
    %51 = vector.broadcast %cst_23 : f32 to vector<8x32xf32>
    %52 = arith.mulf %51, %50 : vector<8x32xf32>
    %cst_24 = arith.constant 1.000000e+00 : f32
    %53 = vector.broadcast %cst_24 : f32 to vector<8x32xf32>
    %54 = arith.subf %52, %53 : vector<8x32xf32>
    %55 = vector.extract_strided_slice %47 {offsets = [0, 96], sizes = [8, 32], strides = [1, 1]} : vector<8x128xf32> to vector<8x32xf32>
    %56 = arith.mulf %49, %36 : vector<8x32xf32>
    %57 = arith.mulf %48, %54 : vector<8x32xf32>
    %58 = arith.addf %56, %57 : vector<8x32xf32>
    %59 = math.tanh %58 : vector<8x32xf32>
    %60 = arith.mulf %55, %59 : vector<8x32xf32>
    %61 = vector.extract_strided_slice %14 {offsets = [16, 0], sizes = [8, 128], strides = [1, 1]} : vector<64x128xf32> to vector<8x128xf32>
    %62 = arith.truncf %60 : vector<8x32xf32> to vector<8x32xbf16>
    %cst_25 = arith.constant dense<0.000000e+00> : vector<8x128xf32>
    %63 = tpu.matmul %62, %0, %cst_25 {dimension_numbers = #tpu.dot_dimension_numbers<[1], [0], [0], [1], [0, 0, 1, 1], [], []>} : vector<8x32xbf16>, vector<32x128xbf16>, vector<8x128xf32> -> vector<8x128xf32>
    %64 = arith.addf %61, %63 : vector<8x128xf32>
    %65 = arith.negf %64 : vector<8x128xf32>
    %66 = math.exp %65 : vector<8x128xf32>
    %cst_26 = arith.constant 1.000000e+00 : f32
    %67 = vector.broadcast %cst_26 : f32 to vector<8x128xf32>
    %68 = arith.addf %67, %66 : vector<8x128xf32>
    %69 = arith.divf %67, %68 : vector<8x128xf32>
    %70 = vector.extract_strided_slice %69 {offsets = [0, 0], sizes = [8, 32], strides = [1, 1]} : vector<8x128xf32> to vector<8x32xf32>
    %71 = vector.extract_strided_slice %69 {offsets = [0, 32], sizes = [8, 32], strides = [1, 1]} : vector<8x128xf32> to vector<8x32xf32>
    %72 = vector.extract_strided_slice %69 {offsets = [0, 64], sizes = [8, 32], strides = [1, 1]} : vector<8x128xf32> to vector<8x32xf32>
    %cst_27 = arith.constant 2.000000e+00 : f32
    %73 = vector.broadcast %cst_27 : f32 to vector<8x32xf32>
    %74 = arith.mulf %73, %72 : vector<8x32xf32>
    %cst_28 = arith.constant 1.000000e+00 : f32
    %75 = vector.broadcast %cst_28 : f32 to vector<8x32xf32>
    %76 = arith.subf %74, %75 : vector<8x32xf32>
    %77 = vector.extract_strided_slice %69 {offsets = [0, 96], sizes = [8, 32], strides = [1, 1]} : vector<8x128xf32> to vector<8x32xf32>
    %78 = arith.mulf %71, %58 : vector<8x32xf32>
    %79 = arith.mulf %70, %76 : vector<8x32xf32>
    %80 = arith.addf %78, %79 : vector<8x32xf32>
    %81 = math.tanh %80 : vector<8x32xf32>
    %82 = arith.mulf %77, %81 : vector<8x32xf32>
    %83 = vector.extract_strided_slice %14 {offsets = [24, 0], sizes = [8, 128], strides = [1, 1]} : vector<64x128xf32> to vector<8x128xf32>
    %84 = arith.truncf %82 : vector<8x32xf32> to vector<8x32xbf16>
    %cst_29 = arith.constant dense<0.000000e+00> : vector<8x128xf32>
    %85 = tpu.matmul %84, %0, %cst_29 {dimension_numbers = #tpu.dot_dimension_numbers<[1], [0], [0], [1], [0, 0, 1, 1], [], []>} : vector<8x32xbf16>, vector<32x128xbf16>, vector<8x128xf32> -> vector<8x128xf32>
    %86 = arith.addf %83, %85 : vector<8x128xf32>
    %87 = arith.negf %86 : vector<8x128xf32>
    %88 = math.exp %87 : vector<8x128xf32>
    %cst_30 = arith.constant 1.000000e+00 : f32
    %89 = vector.broadcast %cst_30 : f32 to vector<8x128xf32>
    %90 = arith.addf %89, %88 : vector<8x128xf32>
    %91 = arith.divf %89, %90 : vector<8x128xf32>
    %92 = vector.extract_strided_slice %91 {offsets = [0, 0], sizes = [8, 32], strides = [1, 1]} : vector<8x128xf32> to vector<8x32xf32>
    %93 = vector.extract_strided_slice %91 {offsets = [0, 32], sizes = [8, 32], strides = [1, 1]} : vector<8x128xf32> to vector<8x32xf32>
    %94 = vector.extract_strided_slice %91 {offsets = [0, 64], sizes = [8, 32], strides = [1, 1]} : vector<8x128xf32> to vector<8x32xf32>
    %cst_31 = arith.constant 2.000000e+00 : f32
    %95 = vector.broadcast %cst_31 : f32 to vector<8x32xf32>
    %96 = arith.mulf %95, %94 : vector<8x32xf32>
    %cst_32 = arith.constant 1.000000e+00 : f32
    %97 = vector.broadcast %cst_32 : f32 to vector<8x32xf32>
    %98 = arith.subf %96, %97 : vector<8x32xf32>
    %99 = vector.extract_strided_slice %91 {offsets = [0, 96], sizes = [8, 32], strides = [1, 1]} : vector<8x128xf32> to vector<8x32xf32>
    %100 = arith.mulf %93, %80 : vector<8x32xf32>
    %101 = arith.mulf %92, %98 : vector<8x32xf32>
    %102 = arith.addf %100, %101 : vector<8x32xf32>
    %103 = math.tanh %102 : vector<8x32xf32>
    %104 = arith.mulf %99, %103 : vector<8x32xf32>
    %105 = vector.extract_strided_slice %14 {offsets = [32, 0], sizes = [8, 128], strides = [1, 1]} : vector<64x128xf32> to vector<8x128xf32>
    %106 = arith.truncf %104 : vector<8x32xf32> to vector<8x32xbf16>
    %cst_33 = arith.constant dense<0.000000e+00> : vector<8x128xf32>
    %107 = tpu.matmul %106, %0, %cst_33 {dimension_numbers = #tpu.dot_dimension_numbers<[1], [0], [0], [1], [0, 0, 1, 1], [], []>} : vector<8x32xbf16>, vector<32x128xbf16>, vector<8x128xf32> -> vector<8x128xf32>
    %108 = arith.addf %105, %107 : vector<8x128xf32>
    %109 = arith.negf %108 : vector<8x128xf32>
    %110 = math.exp %109 : vector<8x128xf32>
    %cst_34 = arith.constant 1.000000e+00 : f32
    %111 = vector.broadcast %cst_34 : f32 to vector<8x128xf32>
    %112 = arith.addf %111, %110 : vector<8x128xf32>
    %113 = arith.divf %111, %112 : vector<8x128xf32>
    %114 = vector.extract_strided_slice %113 {offsets = [0, 0], sizes = [8, 32], strides = [1, 1]} : vector<8x128xf32> to vector<8x32xf32>
    %115 = vector.extract_strided_slice %113 {offsets = [0, 32], sizes = [8, 32], strides = [1, 1]} : vector<8x128xf32> to vector<8x32xf32>
    %116 = vector.extract_strided_slice %113 {offsets = [0, 64], sizes = [8, 32], strides = [1, 1]} : vector<8x128xf32> to vector<8x32xf32>
    %cst_35 = arith.constant 2.000000e+00 : f32
    %117 = vector.broadcast %cst_35 : f32 to vector<8x32xf32>
    %118 = arith.mulf %117, %116 : vector<8x32xf32>
    %cst_36 = arith.constant 1.000000e+00 : f32
    %119 = vector.broadcast %cst_36 : f32 to vector<8x32xf32>
    %120 = arith.subf %118, %119 : vector<8x32xf32>
    %121 = vector.extract_strided_slice %113 {offsets = [0, 96], sizes = [8, 32], strides = [1, 1]} : vector<8x128xf32> to vector<8x32xf32>
    %122 = arith.mulf %115, %102 : vector<8x32xf32>
    %123 = arith.mulf %114, %120 : vector<8x32xf32>
    %124 = arith.addf %122, %123 : vector<8x32xf32>
    %125 = math.tanh %124 : vector<8x32xf32>
    %126 = arith.mulf %121, %125 : vector<8x32xf32>
    %127 = vector.extract_strided_slice %14 {offsets = [40, 0], sizes = [8, 128], strides = [1, 1]} : vector<64x128xf32> to vector<8x128xf32>
    %128 = arith.truncf %126 : vector<8x32xf32> to vector<8x32xbf16>
    %cst_37 = arith.constant dense<0.000000e+00> : vector<8x128xf32>
    %129 = tpu.matmul %128, %0, %cst_37 {dimension_numbers = #tpu.dot_dimension_numbers<[1], [0], [0], [1], [0, 0, 1, 1], [], []>} : vector<8x32xbf16>, vector<32x128xbf16>, vector<8x128xf32> -> vector<8x128xf32>
    %130 = arith.addf %127, %129 : vector<8x128xf32>
    %131 = arith.negf %130 : vector<8x128xf32>
    %132 = math.exp %131 : vector<8x128xf32>
    %cst_38 = arith.constant 1.000000e+00 : f32
    %133 = vector.broadcast %cst_38 : f32 to vector<8x128xf32>
    %134 = arith.addf %133, %132 : vector<8x128xf32>
    %135 = arith.divf %133, %134 : vector<8x128xf32>
    %136 = vector.extract_strided_slice %135 {offsets = [0, 0], sizes = [8, 32], strides = [1, 1]} : vector<8x128xf32> to vector<8x32xf32>
    %137 = vector.extract_strided_slice %135 {offsets = [0, 32], sizes = [8, 32], strides = [1, 1]} : vector<8x128xf32> to vector<8x32xf32>
    %138 = vector.extract_strided_slice %135 {offsets = [0, 64], sizes = [8, 32], strides = [1, 1]} : vector<8x128xf32> to vector<8x32xf32>
    %cst_39 = arith.constant 2.000000e+00 : f32
    %139 = vector.broadcast %cst_39 : f32 to vector<8x32xf32>
    %140 = arith.mulf %139, %138 : vector<8x32xf32>
    %cst_40 = arith.constant 1.000000e+00 : f32
    %141 = vector.broadcast %cst_40 : f32 to vector<8x32xf32>
    %142 = arith.subf %140, %141 : vector<8x32xf32>
    %143 = vector.extract_strided_slice %135 {offsets = [0, 96], sizes = [8, 32], strides = [1, 1]} : vector<8x128xf32> to vector<8x32xf32>
    %144 = arith.mulf %137, %124 : vector<8x32xf32>
    %145 = arith.mulf %136, %142 : vector<8x32xf32>
    %146 = arith.addf %144, %145 : vector<8x32xf32>
    %147 = math.tanh %146 : vector<8x32xf32>
    %148 = arith.mulf %143, %147 : vector<8x32xf32>
    %149 = vector.extract_strided_slice %14 {offsets = [48, 0], sizes = [8, 128], strides = [1, 1]} : vector<64x128xf32> to vector<8x128xf32>
    %150 = arith.truncf %148 : vector<8x32xf32> to vector<8x32xbf16>
    %cst_41 = arith.constant dense<0.000000e+00> : vector<8x128xf32>
    %151 = tpu.matmul %150, %0, %cst_41 {dimension_numbers = #tpu.dot_dimension_numbers<[1], [0], [0], [1], [0, 0, 1, 1], [], []>} : vector<8x32xbf16>, vector<32x128xbf16>, vector<8x128xf32> -> vector<8x128xf32>
    %152 = arith.addf %149, %151 : vector<8x128xf32>
    %153 = arith.negf %152 : vector<8x128xf32>
    %154 = math.exp %153 : vector<8x128xf32>
    %cst_42 = arith.constant 1.000000e+00 : f32
    %155 = vector.broadcast %cst_42 : f32 to vector<8x128xf32>
    %156 = arith.addf %155, %154 : vector<8x128xf32>
    %157 = arith.divf %155, %156 : vector<8x128xf32>
    %158 = vector.extract_strided_slice %157 {offsets = [0, 0], sizes = [8, 32], strides = [1, 1]} : vector<8x128xf32> to vector<8x32xf32>
    %159 = vector.extract_strided_slice %157 {offsets = [0, 32], sizes = [8, 32], strides = [1, 1]} : vector<8x128xf32> to vector<8x32xf32>
    %160 = vector.extract_strided_slice %157 {offsets = [0, 64], sizes = [8, 32], strides = [1, 1]} : vector<8x128xf32> to vector<8x32xf32>
    %cst_43 = arith.constant 2.000000e+00 : f32
    %161 = vector.broadcast %cst_43 : f32 to vector<8x32xf32>
    %162 = arith.mulf %161, %160 : vector<8x32xf32>
    %cst_44 = arith.constant 1.000000e+00 : f32
    %163 = vector.broadcast %cst_44 : f32 to vector<8x32xf32>
    %164 = arith.subf %162, %163 : vector<8x32xf32>
    %165 = vector.extract_strided_slice %157 {offsets = [0, 96], sizes = [8, 32], strides = [1, 1]} : vector<8x128xf32> to vector<8x32xf32>
    %166 = arith.mulf %159, %146 : vector<8x32xf32>
    %167 = arith.mulf %158, %164 : vector<8x32xf32>
    %168 = arith.addf %166, %167 : vector<8x32xf32>
    %169 = math.tanh %168 : vector<8x32xf32>
    %170 = arith.mulf %165, %169 : vector<8x32xf32>
    %171 = vector.extract_strided_slice %14 {offsets = [56, 0], sizes = [8, 128], strides = [1, 1]} : vector<64x128xf32> to vector<8x128xf32>
    %172 = arith.truncf %170 : vector<8x32xf32> to vector<8x32xbf16>
    %cst_45 = arith.constant dense<0.000000e+00> : vector<8x128xf32>
    %173 = tpu.matmul %172, %0, %cst_45 {dimension_numbers = #tpu.dot_dimension_numbers<[1], [0], [0], [1], [0, 0, 1, 1], [], []>} : vector<8x32xbf16>, vector<32x128xbf16>, vector<8x128xf32> -> vector<8x128xf32>
    %174 = arith.addf %171, %173 : vector<8x128xf32>
    %175 = arith.negf %174 : vector<8x128xf32>
    %176 = math.exp %175 : vector<8x128xf32>
    %cst_46 = arith.constant 1.000000e+00 : f32
    %177 = vector.broadcast %cst_46 : f32 to vector<8x128xf32>
    %178 = arith.addf %177, %176 : vector<8x128xf32>
    %179 = arith.divf %177, %178 : vector<8x128xf32>
    %180 = vector.extract_strided_slice %179 {offsets = [0, 0], sizes = [8, 32], strides = [1, 1]} : vector<8x128xf32> to vector<8x32xf32>
    %181 = vector.extract_strided_slice %179 {offsets = [0, 32], sizes = [8, 32], strides = [1, 1]} : vector<8x128xf32> to vector<8x32xf32>
    %182 = vector.extract_strided_slice %179 {offsets = [0, 64], sizes = [8, 32], strides = [1, 1]} : vector<8x128xf32> to vector<8x32xf32>
    %cst_47 = arith.constant 2.000000e+00 : f32
    %183 = vector.broadcast %cst_47 : f32 to vector<8x32xf32>
    %184 = arith.mulf %183, %182 : vector<8x32xf32>
    %cst_48 = arith.constant 1.000000e+00 : f32
    %185 = vector.broadcast %cst_48 : f32 to vector<8x32xf32>
    %186 = arith.subf %184, %185 : vector<8x32xf32>
    %187 = vector.extract_strided_slice %179 {offsets = [0, 96], sizes = [8, 32], strides = [1, 1]} : vector<8x128xf32> to vector<8x32xf32>
    %188 = arith.mulf %181, %168 : vector<8x32xf32>
    %189 = arith.mulf %180, %186 : vector<8x32xf32>
    %190 = arith.addf %188, %189 : vector<8x32xf32>
    %191 = math.tanh %190 : vector<8x32xf32>
    %192 = arith.mulf %187, %191 : vector<8x32xf32>
    %cst_49 = arith.constant dense<0.000000e+00> : vector<8x16xf32>
    %193 = tpu.matmul %192, %9, %cst_49 {dimension_numbers = #tpu.dot_dimension_numbers<[1], [0], [0], [1], [0, 0, 1, 1], [], []>} : vector<8x32xf32>, vector<32x16xf32>, vector<8x16xf32> -> vector<8x16xf32>
    %194 = vector.broadcast %4 : vector<1x16xf32> to vector<8x16xf32>
    %195 = arith.addf %193, %194 : vector<8x16xf32>
    %cst_50 = arith.constant dense<0.000000e+00> : vector<8x32xf32>
    %196 = tpu.matmul %195, %10, %cst_50 {dimension_numbers = #tpu.dot_dimension_numbers<[1], [0], [0], [1], [0, 0, 1, 1], [], []>} : vector<8x16xf32>, vector<16x32xf32>, vector<8x32xf32> -> vector<8x32xf32>
    %197 = vector.broadcast %5 : vector<1x32xf32> to vector<8x32xf32>
    %198 = arith.addf %196, %197 : vector<8x32xf32>
    %cst_51 = arith.constant 0.000000e+00 : f32
    %199 = vector.broadcast %cst_51 : f32 to vector<8x32xf32>
    %200 = arith.truncf %198 : vector<8x32xf32> to vector<8x32xbf16>
    %cst_52 = arith.constant dense<0.000000e+00> : vector<8x128xf32>
    %201 = tpu.matmul %200, %1, %cst_52 {dimension_numbers = #tpu.dot_dimension_numbers<[1], [0], [0], [1], [0, 0, 1, 1], [], []>} : vector<8x32xbf16>, vector<32x128xbf16>, vector<8x128xf32> -> vector<8x128xf32>
    %202 = vector.broadcast %3 : vector<1x128xf32> to vector<8x128xf32>
    %203 = arith.addf %201, %202 : vector<8x128xf32>
    %204 = arith.negf %203 : vector<8x128xf32>
    %205 = math.exp %204 : vector<8x128xf32>
    %cst_53 = arith.constant 1.000000e+00 : f32
    %206 = vector.broadcast %cst_53 : f32 to vector<8x128xf32>
    %207 = arith.addf %206, %205 : vector<8x128xf32>
    %208 = arith.divf %206, %207 : vector<8x128xf32>
    %209 = vector.extract_strided_slice %208 {offsets = [0, 0], sizes = [8, 32], strides = [1, 1]} : vector<8x128xf32> to vector<8x32xf32>
    %210 = vector.extract_strided_slice %208 {offsets = [0, 32], sizes = [8, 32], strides = [1, 1]} : vector<8x128xf32> to vector<8x32xf32>
    %211 = vector.extract_strided_slice %208 {offsets = [0, 64], sizes = [8, 32], strides = [1, 1]} : vector<8x128xf32> to vector<8x32xf32>
    %cst_54 = arith.constant 2.000000e+00 : f32
    %212 = vector.broadcast %cst_54 : f32 to vector<8x32xf32>
    %213 = arith.mulf %212, %211 : vector<8x32xf32>
    %cst_55 = arith.constant 1.000000e+00 : f32
    %214 = vector.broadcast %cst_55 : f32 to vector<8x32xf32>
    %215 = arith.subf %213, %214 : vector<8x32xf32>
    %216 = vector.extract_strided_slice %208 {offsets = [0, 96], sizes = [8, 32], strides = [1, 1]} : vector<8x128xf32> to vector<8x32xf32>
    %217 = arith.mulf %210, %199 : vector<8x32xf32>
    %218 = arith.mulf %209, %215 : vector<8x32xf32>
    %219 = arith.addf %217, %218 : vector<8x32xf32>
    %220 = math.tanh %219 : vector<8x32xf32>
    %221 = arith.mulf %216, %220 : vector<8x32xf32>
    %222 = vector.broadcast %6 : vector<1x32xf32> to vector<8x32xf32>
    %223 = arith.mulf %221, %222 : vector<8x32xf32>
    %cst_56 = arith.constant dense<0.000000e+00> : vector<8xf32>
    %224 = vector.multi_reduction <add>, %223, %cst_56 [1] : vector<8x32xf32> to vector<8xf32>
    %225 = vector.shape_cast %224 : vector<8xf32> to vector<8x1xf32>
    %226 = vector.broadcast %7 : vector<1x1xf32> to vector<8x1xf32>
    %227 = arith.addf %225, %226 : vector<8x1xf32>
    %228 = arith.truncf %221 : vector<8x32xf32> to vector<8x32xbf16>
    %cst_57 = arith.constant dense<0.000000e+00> : vector<8x128xf32>
    %229 = tpu.matmul %228, %1, %cst_57 {dimension_numbers = #tpu.dot_dimension_numbers<[1], [0], [0], [1], [0, 0, 1, 1], [], []>} : vector<8x32xbf16>, vector<32x128xbf16>, vector<8x128xf32> -> vector<8x128xf32>
    %230 = vector.broadcast %3 : vector<1x128xf32> to vector<8x128xf32>
    %231 = arith.addf %229, %230 : vector<8x128xf32>
    %232 = arith.negf %231 : vector<8x128xf32>
    %233 = math.exp %232 : vector<8x128xf32>
    %cst_58 = arith.constant 1.000000e+00 : f32
    %234 = vector.broadcast %cst_58 : f32 to vector<8x128xf32>
    %235 = arith.addf %234, %233 : vector<8x128xf32>
    %236 = arith.divf %234, %235 : vector<8x128xf32>
    %237 = vector.extract_strided_slice %236 {offsets = [0, 0], sizes = [8, 32], strides = [1, 1]} : vector<8x128xf32> to vector<8x32xf32>
    %238 = vector.extract_strided_slice %236 {offsets = [0, 32], sizes = [8, 32], strides = [1, 1]} : vector<8x128xf32> to vector<8x32xf32>
    %239 = vector.extract_strided_slice %236 {offsets = [0, 64], sizes = [8, 32], strides = [1, 1]} : vector<8x128xf32> to vector<8x32xf32>
    %cst_59 = arith.constant 2.000000e+00 : f32
    %240 = vector.broadcast %cst_59 : f32 to vector<8x32xf32>
    %241 = arith.mulf %240, %239 : vector<8x32xf32>
    %cst_60 = arith.constant 1.000000e+00 : f32
    %242 = vector.broadcast %cst_60 : f32 to vector<8x32xf32>
    %243 = arith.subf %241, %242 : vector<8x32xf32>
    %244 = vector.extract_strided_slice %236 {offsets = [0, 96], sizes = [8, 32], strides = [1, 1]} : vector<8x128xf32> to vector<8x32xf32>
    %245 = arith.mulf %238, %219 : vector<8x32xf32>
    %246 = arith.mulf %237, %243 : vector<8x32xf32>
    %247 = arith.addf %245, %246 : vector<8x32xf32>
    %248 = math.tanh %247 : vector<8x32xf32>
    %249 = arith.mulf %244, %248 : vector<8x32xf32>
    %250 = vector.broadcast %6 : vector<1x32xf32> to vector<8x32xf32>
    %251 = arith.mulf %249, %250 : vector<8x32xf32>
    %cst_61 = arith.constant dense<0.000000e+00> : vector<8xf32>
    %252 = vector.multi_reduction <add>, %251, %cst_61 [1] : vector<8x32xf32> to vector<8xf32>
    %253 = vector.shape_cast %252 : vector<8xf32> to vector<8x1xf32>
    %254 = vector.broadcast %7 : vector<1x1xf32> to vector<8x1xf32>
    %255 = arith.addf %253, %254 : vector<8x1xf32>
    %256 = arith.truncf %249 : vector<8x32xf32> to vector<8x32xbf16>
    %cst_62 = arith.constant dense<0.000000e+00> : vector<8x128xf32>
    %257 = tpu.matmul %256, %1, %cst_62 {dimension_numbers = #tpu.dot_dimension_numbers<[1], [0], [0], [1], [0, 0, 1, 1], [], []>} : vector<8x32xbf16>, vector<32x128xbf16>, vector<8x128xf32> -> vector<8x128xf32>
    %258 = vector.broadcast %3 : vector<1x128xf32> to vector<8x128xf32>
    %259 = arith.addf %257, %258 : vector<8x128xf32>
    %260 = arith.negf %259 : vector<8x128xf32>
    %261 = math.exp %260 : vector<8x128xf32>
    %cst_63 = arith.constant 1.000000e+00 : f32
    %262 = vector.broadcast %cst_63 : f32 to vector<8x128xf32>
    %263 = arith.addf %262, %261 : vector<8x128xf32>
    %264 = arith.divf %262, %263 : vector<8x128xf32>
    %265 = vector.extract_strided_slice %264 {offsets = [0, 0], sizes = [8, 32], strides = [1, 1]} : vector<8x128xf32> to vector<8x32xf32>
    %266 = vector.extract_strided_slice %264 {offsets = [0, 32], sizes = [8, 32], strides = [1, 1]} : vector<8x128xf32> to vector<8x32xf32>
    %267 = vector.extract_strided_slice %264 {offsets = [0, 64], sizes = [8, 32], strides = [1, 1]} : vector<8x128xf32> to vector<8x32xf32>
    %cst_64 = arith.constant 2.000000e+00 : f32
    %268 = vector.broadcast %cst_64 : f32 to vector<8x32xf32>
    %269 = arith.mulf %268, %267 : vector<8x32xf32>
    %cst_65 = arith.constant 1.000000e+00 : f32
    %270 = vector.broadcast %cst_65 : f32 to vector<8x32xf32>
    %271 = arith.subf %269, %270 : vector<8x32xf32>
    %272 = vector.extract_strided_slice %264 {offsets = [0, 96], sizes = [8, 32], strides = [1, 1]} : vector<8x128xf32> to vector<8x32xf32>
    %273 = arith.mulf %266, %247 : vector<8x32xf32>
    %274 = arith.mulf %265, %271 : vector<8x32xf32>
    %275 = arith.addf %273, %274 : vector<8x32xf32>
    %276 = math.tanh %275 : vector<8x32xf32>
    %277 = arith.mulf %272, %276 : vector<8x32xf32>
    %278 = vector.broadcast %6 : vector<1x32xf32> to vector<8x32xf32>
    %279 = arith.mulf %277, %278 : vector<8x32xf32>
    %cst_66 = arith.constant dense<0.000000e+00> : vector<8xf32>
    %280 = vector.multi_reduction <add>, %279, %cst_66 [1] : vector<8x32xf32> to vector<8xf32>
    %281 = vector.shape_cast %280 : vector<8xf32> to vector<8x1xf32>
    %282 = vector.broadcast %7 : vector<1x1xf32> to vector<8x1xf32>
    %283 = arith.addf %281, %282 : vector<8x1xf32>
    %284 = arith.truncf %277 : vector<8x32xf32> to vector<8x32xbf16>
    %cst_67 = arith.constant dense<0.000000e+00> : vector<8x128xf32>
    %285 = tpu.matmul %284, %1, %cst_67 {dimension_numbers = #tpu.dot_dimension_numbers<[1], [0], [0], [1], [0, 0, 1, 1], [], []>} : vector<8x32xbf16>, vector<32x128xbf16>, vector<8x128xf32> -> vector<8x128xf32>
    %286 = vector.broadcast %3 : vector<1x128xf32> to vector<8x128xf32>
    %287 = arith.addf %285, %286 : vector<8x128xf32>
    %288 = arith.negf %287 : vector<8x128xf32>
    %289 = math.exp %288 : vector<8x128xf32>
    %cst_68 = arith.constant 1.000000e+00 : f32
    %290 = vector.broadcast %cst_68 : f32 to vector<8x128xf32>
    %291 = arith.addf %290, %289 : vector<8x128xf32>
    %292 = arith.divf %290, %291 : vector<8x128xf32>
    %293 = vector.extract_strided_slice %292 {offsets = [0, 0], sizes = [8, 32], strides = [1, 1]} : vector<8x128xf32> to vector<8x32xf32>
    %294 = vector.extract_strided_slice %292 {offsets = [0, 32], sizes = [8, 32], strides = [1, 1]} : vector<8x128xf32> to vector<8x32xf32>
    %295 = vector.extract_strided_slice %292 {offsets = [0, 64], sizes = [8, 32], strides = [1, 1]} : vector<8x128xf32> to vector<8x32xf32>
    %cst_69 = arith.constant 2.000000e+00 : f32
    %296 = vector.broadcast %cst_69 : f32 to vector<8x32xf32>
    %297 = arith.mulf %296, %295 : vector<8x32xf32>
    %cst_70 = arith.constant 1.000000e+00 : f32
    %298 = vector.broadcast %cst_70 : f32 to vector<8x32xf32>
    %299 = arith.subf %297, %298 : vector<8x32xf32>
    %300 = vector.extract_strided_slice %292 {offsets = [0, 96], sizes = [8, 32], strides = [1, 1]} : vector<8x128xf32> to vector<8x32xf32>
    %301 = arith.mulf %294, %275 : vector<8x32xf32>
    %302 = arith.mulf %293, %299 : vector<8x32xf32>
    %303 = arith.addf %301, %302 : vector<8x32xf32>
    %304 = math.tanh %303 : vector<8x32xf32>
    %305 = arith.mulf %300, %304 : vector<8x32xf32>
    %306 = vector.broadcast %6 : vector<1x32xf32> to vector<8x32xf32>
    %307 = arith.mulf %305, %306 : vector<8x32xf32>
    %cst_71 = arith.constant dense<0.000000e+00> : vector<8xf32>
    %308 = vector.multi_reduction <add>, %307, %cst_71 [1] : vector<8x32xf32> to vector<8xf32>
    %309 = vector.shape_cast %308 : vector<8xf32> to vector<8x1xf32>
    %310 = vector.broadcast %7 : vector<1x1xf32> to vector<8x1xf32>
    %311 = arith.addf %309, %310 : vector<8x1xf32>
    %312 = arith.truncf %305 : vector<8x32xf32> to vector<8x32xbf16>
    %cst_72 = arith.constant dense<0.000000e+00> : vector<8x128xf32>
    %313 = tpu.matmul %312, %1, %cst_72 {dimension_numbers = #tpu.dot_dimension_numbers<[1], [0], [0], [1], [0, 0, 1, 1], [], []>} : vector<8x32xbf16>, vector<32x128xbf16>, vector<8x128xf32> -> vector<8x128xf32>
    %314 = vector.broadcast %3 : vector<1x128xf32> to vector<8x128xf32>
    %315 = arith.addf %313, %314 : vector<8x128xf32>
    %316 = arith.negf %315 : vector<8x128xf32>
    %317 = math.exp %316 : vector<8x128xf32>
    %cst_73 = arith.constant 1.000000e+00 : f32
    %318 = vector.broadcast %cst_73 : f32 to vector<8x128xf32>
    %319 = arith.addf %318, %317 : vector<8x128xf32>
    %320 = arith.divf %318, %319 : vector<8x128xf32>
    %321 = vector.extract_strided_slice %320 {offsets = [0, 0], sizes = [8, 32], strides = [1, 1]} : vector<8x128xf32> to vector<8x32xf32>
    %322 = vector.extract_strided_slice %320 {offsets = [0, 32], sizes = [8, 32], strides = [1, 1]} : vector<8x128xf32> to vector<8x32xf32>
    %323 = vector.extract_strided_slice %320 {offsets = [0, 64], sizes = [8, 32], strides = [1, 1]} : vector<8x128xf32> to vector<8x32xf32>
    %cst_74 = arith.constant 2.000000e+00 : f32
    %324 = vector.broadcast %cst_74 : f32 to vector<8x32xf32>
    %325 = arith.mulf %324, %323 : vector<8x32xf32>
    %cst_75 = arith.constant 1.000000e+00 : f32
    %326 = vector.broadcast %cst_75 : f32 to vector<8x32xf32>
    %327 = arith.subf %325, %326 : vector<8x32xf32>
    %328 = vector.extract_strided_slice %320 {offsets = [0, 96], sizes = [8, 32], strides = [1, 1]} : vector<8x128xf32> to vector<8x32xf32>
    %329 = arith.mulf %322, %303 : vector<8x32xf32>
    %330 = arith.mulf %321, %327 : vector<8x32xf32>
    %331 = arith.addf %329, %330 : vector<8x32xf32>
    %332 = math.tanh %331 : vector<8x32xf32>
    %333 = arith.mulf %328, %332 : vector<8x32xf32>
    %334 = vector.broadcast %6 : vector<1x32xf32> to vector<8x32xf32>
    %335 = arith.mulf %333, %334 : vector<8x32xf32>
    %cst_76 = arith.constant dense<0.000000e+00> : vector<8xf32>
    %336 = vector.multi_reduction <add>, %335, %cst_76 [1] : vector<8x32xf32> to vector<8xf32>
    %337 = vector.shape_cast %336 : vector<8xf32> to vector<8x1xf32>
    %338 = vector.broadcast %7 : vector<1x1xf32> to vector<8x1xf32>
    %339 = arith.addf %337, %338 : vector<8x1xf32>
    %340 = arith.truncf %333 : vector<8x32xf32> to vector<8x32xbf16>
    %cst_77 = arith.constant dense<0.000000e+00> : vector<8x128xf32>
    %341 = tpu.matmul %340, %1, %cst_77 {dimension_numbers = #tpu.dot_dimension_numbers<[1], [0], [0], [1], [0, 0, 1, 1], [], []>} : vector<8x32xbf16>, vector<32x128xbf16>, vector<8x128xf32> -> vector<8x128xf32>
    %342 = vector.broadcast %3 : vector<1x128xf32> to vector<8x128xf32>
    %343 = arith.addf %341, %342 : vector<8x128xf32>
    %344 = arith.negf %343 : vector<8x128xf32>
    %345 = math.exp %344 : vector<8x128xf32>
    %cst_78 = arith.constant 1.000000e+00 : f32
    %346 = vector.broadcast %cst_78 : f32 to vector<8x128xf32>
    %347 = arith.addf %346, %345 : vector<8x128xf32>
    %348 = arith.divf %346, %347 : vector<8x128xf32>
    %349 = vector.extract_strided_slice %348 {offsets = [0, 0], sizes = [8, 32], strides = [1, 1]} : vector<8x128xf32> to vector<8x32xf32>
    %350 = vector.extract_strided_slice %348 {offsets = [0, 32], sizes = [8, 32], strides = [1, 1]} : vector<8x128xf32> to vector<8x32xf32>
    %351 = vector.extract_strided_slice %348 {offsets = [0, 64], sizes = [8, 32], strides = [1, 1]} : vector<8x128xf32> to vector<8x32xf32>
    %cst_79 = arith.constant 2.000000e+00 : f32
    %352 = vector.broadcast %cst_79 : f32 to vector<8x32xf32>
    %353 = arith.mulf %352, %351 : vector<8x32xf32>
    %cst_80 = arith.constant 1.000000e+00 : f32
    %354 = vector.broadcast %cst_80 : f32 to vector<8x32xf32>
    %355 = arith.subf %353, %354 : vector<8x32xf32>
    %356 = vector.extract_strided_slice %348 {offsets = [0, 96], sizes = [8, 32], strides = [1, 1]} : vector<8x128xf32> to vector<8x32xf32>
    %357 = arith.mulf %350, %331 : vector<8x32xf32>
    %358 = arith.mulf %349, %355 : vector<8x32xf32>
    %359 = arith.addf %357, %358 : vector<8x32xf32>
    %360 = math.tanh %359 : vector<8x32xf32>
    %361 = arith.mulf %356, %360 : vector<8x32xf32>
    %362 = vector.broadcast %6 : vector<1x32xf32> to vector<8x32xf32>
    %363 = arith.mulf %361, %362 : vector<8x32xf32>
    %cst_81 = arith.constant dense<0.000000e+00> : vector<8xf32>
    %364 = vector.multi_reduction <add>, %363, %cst_81 [1] : vector<8x32xf32> to vector<8xf32>
    %365 = vector.shape_cast %364 : vector<8xf32> to vector<8x1xf32>
    %366 = vector.broadcast %7 : vector<1x1xf32> to vector<8x1xf32>
    %367 = arith.addf %365, %366 : vector<8x1xf32>
    %368 = arith.truncf %361 : vector<8x32xf32> to vector<8x32xbf16>
    %cst_82 = arith.constant dense<0.000000e+00> : vector<8x128xf32>
    %369 = tpu.matmul %368, %1, %cst_82 {dimension_numbers = #tpu.dot_dimension_numbers<[1], [0], [0], [1], [0, 0, 1, 1], [], []>} : vector<8x32xbf16>, vector<32x128xbf16>, vector<8x128xf32> -> vector<8x128xf32>
    %370 = vector.broadcast %3 : vector<1x128xf32> to vector<8x128xf32>
    %371 = arith.addf %369, %370 : vector<8x128xf32>
    %372 = arith.negf %371 : vector<8x128xf32>
    %373 = math.exp %372 : vector<8x128xf32>
    %cst_83 = arith.constant 1.000000e+00 : f32
    %374 = vector.broadcast %cst_83 : f32 to vector<8x128xf32>
    %375 = arith.addf %374, %373 : vector<8x128xf32>
    %376 = arith.divf %374, %375 : vector<8x128xf32>
    %377 = vector.extract_strided_slice %376 {offsets = [0, 0], sizes = [8, 32], strides = [1, 1]} : vector<8x128xf32> to vector<8x32xf32>
    %378 = vector.extract_strided_slice %376 {offsets = [0, 32], sizes = [8, 32], strides = [1, 1]} : vector<8x128xf32> to vector<8x32xf32>
    %379 = vector.extract_strided_slice %376 {offsets = [0, 64], sizes = [8, 32], strides = [1, 1]} : vector<8x128xf32> to vector<8x32xf32>
    %cst_84 = arith.constant 2.000000e+00 : f32
    %380 = vector.broadcast %cst_84 : f32 to vector<8x32xf32>
    %381 = arith.mulf %380, %379 : vector<8x32xf32>
    %cst_85 = arith.constant 1.000000e+00 : f32
    %382 = vector.broadcast %cst_85 : f32 to vector<8x32xf32>
    %383 = arith.subf %381, %382 : vector<8x32xf32>
    %384 = vector.extract_strided_slice %376 {offsets = [0, 96], sizes = [8, 32], strides = [1, 1]} : vector<8x128xf32> to vector<8x32xf32>
    %385 = arith.mulf %378, %359 : vector<8x32xf32>
    %386 = arith.mulf %377, %383 : vector<8x32xf32>
    %387 = arith.addf %385, %386 : vector<8x32xf32>
    %388 = math.tanh %387 : vector<8x32xf32>
    %389 = arith.mulf %384, %388 : vector<8x32xf32>
    %390 = vector.broadcast %6 : vector<1x32xf32> to vector<8x32xf32>
    %391 = arith.mulf %389, %390 : vector<8x32xf32>
    %cst_86 = arith.constant dense<0.000000e+00> : vector<8xf32>
    %392 = vector.multi_reduction <add>, %391, %cst_86 [1] : vector<8x32xf32> to vector<8xf32>
    %393 = vector.shape_cast %392 : vector<8xf32> to vector<8x1xf32>
    %394 = vector.broadcast %7 : vector<1x1xf32> to vector<8x1xf32>
    %395 = arith.addf %393, %394 : vector<8x1xf32>
    %396 = arith.truncf %389 : vector<8x32xf32> to vector<8x32xbf16>
    %cst_87 = arith.constant dense<0.000000e+00> : vector<8x128xf32>
    %397 = tpu.matmul %396, %1, %cst_87 {dimension_numbers = #tpu.dot_dimension_numbers<[1], [0], [0], [1], [0, 0, 1, 1], [], []>} : vector<8x32xbf16>, vector<32x128xbf16>, vector<8x128xf32> -> vector<8x128xf32>
    %398 = vector.broadcast %3 : vector<1x128xf32> to vector<8x128xf32>
    %399 = arith.addf %397, %398 : vector<8x128xf32>
    %400 = arith.negf %399 : vector<8x128xf32>
    %401 = math.exp %400 : vector<8x128xf32>
    %cst_88 = arith.constant 1.000000e+00 : f32
    %402 = vector.broadcast %cst_88 : f32 to vector<8x128xf32>
    %403 = arith.addf %402, %401 : vector<8x128xf32>
    %404 = arith.divf %402, %403 : vector<8x128xf32>
    %405 = vector.extract_strided_slice %404 {offsets = [0, 0], sizes = [8, 32], strides = [1, 1]} : vector<8x128xf32> to vector<8x32xf32>
    %406 = vector.extract_strided_slice %404 {offsets = [0, 32], sizes = [8, 32], strides = [1, 1]} : vector<8x128xf32> to vector<8x32xf32>
    %407 = vector.extract_strided_slice %404 {offsets = [0, 64], sizes = [8, 32], strides = [1, 1]} : vector<8x128xf32> to vector<8x32xf32>
    %cst_89 = arith.constant 2.000000e+00 : f32
    %408 = vector.broadcast %cst_89 : f32 to vector<8x32xf32>
    %409 = arith.mulf %408, %407 : vector<8x32xf32>
    %cst_90 = arith.constant 1.000000e+00 : f32
    %410 = vector.broadcast %cst_90 : f32 to vector<8x32xf32>
    %411 = arith.subf %409, %410 : vector<8x32xf32>
    %412 = vector.extract_strided_slice %404 {offsets = [0, 96], sizes = [8, 32], strides = [1, 1]} : vector<8x128xf32> to vector<8x32xf32>
    %413 = arith.mulf %406, %387 : vector<8x32xf32>
    %414 = arith.mulf %405, %411 : vector<8x32xf32>
    %415 = arith.addf %413, %414 : vector<8x32xf32>
    %416 = math.tanh %415 : vector<8x32xf32>
    %417 = arith.mulf %412, %416 : vector<8x32xf32>
    %418 = vector.broadcast %6 : vector<1x32xf32> to vector<8x32xf32>
    %419 = arith.mulf %417, %418 : vector<8x32xf32>
    %cst_91 = arith.constant dense<0.000000e+00> : vector<8xf32>
    %420 = vector.multi_reduction <add>, %419, %cst_91 [1] : vector<8x32xf32> to vector<8xf32>
    %421 = vector.shape_cast %420 : vector<8xf32> to vector<8x1xf32>
    %422 = vector.broadcast %7 : vector<1x1xf32> to vector<8x1xf32>
    %423 = arith.addf %421, %422 : vector<8x1xf32>
    %424 = tpu.concatenate %227, %255, %283, %311, %339, %367, %395, %423 in 1 : vector<8x1xf32>, vector<8x1xf32>, vector<8x1xf32>, vector<8x1xf32>, vector<8x1xf32>, vector<8x1xf32>, vector<8x1xf32>, vector<8x1xf32> -> vector<8x8xf32>
    %cst_92 = arith.constant 0.000000e+00 : f32
    %425 = vector.broadcast %cst_92 : f32 to vector<8x104xf32>
    %426 = tpu.concatenate %424, %195, %425 in 1 : vector<8x8xf32>, vector<8x16xf32>, vector<8x104xf32> -> vector<8x128xf32>
    %c0_93 = arith.constant 0 : index
    %c0_94 = arith.constant 0 : index
    %427 = vector.load %arg3[%c0_93, %c0_94] : memref<8x128xf32, #tpu.memory_space<vmem>>, vector<8x128xf32>
    tpu.vector_store %arg3[%c0_93, %c0_94], %426 {strides = array<i32>} : memref<8x128xf32, #tpu.memory_space<vmem>>, vector<8x128xf32>,
    return
  }
}

</mosaic_0001>

<llo_original>
// kernel: vrae_forward.1
$region0: #{vrae_forward.1}
  #allocation0 [shape = 'u32[]', space=smem, size = 0x4, offset = 0x4, fixed_abs, tag = 'smem constant byte address 0x4 - core index']
  #allocation1 [shape = 'u32[144,128]{1,0:T(1,128)}', space=vmem, size = 0x12000, scoped, tag = 'internal scratch']
  %s0 = inlined_call_operand.vmem [shape: f32[64,4], index: 0, kind: input, shape index: {}]
  %s1 = inlined_call_operand.vmem [shape: bf16[64,128], index: 1, kind: input, shape index: {}]
  %s2 = inlined_call_operand.vmem [shape: f32[64,128], index: 2, kind: input, shape index: {}]
  %s3 = inlined_call_operand.vmem [shape: f32[8,128], index: 3, kind: output, shape index: {}]
  %s4 = sld [smem:[#allocation0]]
  $region22: #{vrae_forward.1} parent=0
    _
  %s6 = ssub.s32 1, %s4
  %s7 = scalar_select 0, %s6, %s4
  // Predicated region
  $region2: #{vrae_forward.1} parent=0 // pred_check
    _
  $region3: #{vrae_forward.1} parent=0 // pred_check_branch
    %9 = sbr.rel (0) target = $region5
  $region4: #{vrae_forward.1} parent=0 // pred_region
    _
  $region5: #{vrae_forward.1} parent=0 // pred_fallthru
    _
  // Predicated region
  $region6: #{vrae_forward.1} parent=0 // pred_check
    _
  $region7: #{vrae_forward.1} parent=0 // pred_check_branch
    %11 = sbr.rel (0) target = $region9
  $region8: #{vrae_forward.1} parent=0 // pred_region
    _
  $region9: #{vrae_forward.1} parent=0 // pred_fallthru
    _
  // Predicated region
  $region10: #{vrae_forward.1} parent=0 // pred_check
    _
  $region11: #{vrae_forward.1} parent=0 // pred_check_branch
    %13 = sbr.rel (0) target = $region13
  $region12: #{vrae_forward.1} parent=0 // pred_region
    _
  $region13: #{vrae_forward.1} parent=0 // pred_fallthru
    _
  %v15 = vld [vmem:[%s1] sm:$0xf]
  %v16 = vld [vmem:[%s1 + $0x4] sm:$0xf]
  %v17 = vld [vmem:[%s1 + $0x8] sm:$0xf]
  %v18 = vld [vmem:[%s1 + $0xc] sm:$0xf]
  %v19 = vld [vmem:[%s1 + $0x10] sm:$0xf]
  %v20 = vld [vmem:[%s1 + $0x14] sm:$0xf]
  %v21 = vld [vmem:[%s1 + $0x18] sm:$0xf]
  %v22 = vld [vmem:[%s1 + $0x1c] sm:$0xf]
  %v23 = vld [vmem:[%s2] sm:$0x1]
  %v24 = vld [vmem:[%s2 + $0x1] sm:$0x1]
  %v25 = vld [vmem:[%s2 + $0x2] sm:$0x1]
  %v26 = vld [vmem:[%s2 + $0x3] sm:$0x1]
  %v27 = vld [vmem:[%s2 + $0x4] sm:$0x1]
  %v28 = vld [vmem:[%s2 + $0x5] sm:$0xf]
  %v29 = vld [vmem:[%s2 + $0x9] sm:$0xff]
  %v30 = vld [vmem:[%s2 + $0x11] sm:$0xff]
  %v31 = vld [vmem:[%s2 + $0x19] sm:$0xff]
  %v32 = vld [vmem:[%s2 + $0x21] sm:$0xff]
  %v33 = vld [vmem:[%s2 + $0x29] sm:$0xff]
  %v34 = vld [vmem:[%s2 + $0x31] sm:$0xff]
  %v35 = vld [vmem:[%s0] sm:$0xff]
  %v36 = vld [vmem:[%s0 + $0x8] sm:$0xff]
  %v37 = vld [vmem:[%s0 + $0x10] sm:$0xff]
  %v38 = vld [vmem:[%s0 + $0x18] sm:$0xff]
  %v39 = vld [vmem:[%s0 + $0x20] sm:$0xff]
  %v40 = vld [vmem:[%s0 + $0x28] sm:$0xff]
  %v41 = vld [vmem:[%s0 + $0x30] sm:$0xff]
  %v42 = vld [vmem:[%s0 + $0x38] sm:$0xff]
  %v43 = vlaneseq
  %v44 = vshrl.u32 %v43, 7
  %v45 = vsub.s32 0, %v44
  %v46 = vrot.slane %v23, %v45
  %vm47 = vcmask 31744
  %v49 = vsel %vm47, %v35, 0
  %v52 = vsel %vm47, %v36, 0
  %v55 = vsel %vm47, %v37, 0
  %v58 = vsel %vm47, %v38, 0
  %v61 = vsel %vm47, %v39, 0
  %v64 = vsel %vm47, %v40, 0
  %v67 = vsel %vm47, %v41, 0
  %v70 = vsel %vm47, %v42, 0
  %vm72 = vcmask 1043456
  %v74 = vsel %vm72, %v28, 0
  %76 = vmatprep.subr.mxu0 0.0
  %77 = vmatpush1.msra.mxu0 %v74
  %78 = vmatprep.subr.mxu0 0.0
  %79 = vmatpush1.msra.mxu0 0.0
  %80 = vmatprep.subr.mxu0 0.0
  %81 = vmatpush1.msra.mxu0 0.0
  %82 = vmatprep.subr.mxu0 0.0
  %83 = vmatpush1.msra.mxu0 0.0
  %84 = vmatprep.subr.mxu0 0.0
  %85 = vmatpush1.msra.mxu0 0.0
  %86 = vmatprep.subr.mxu0 0.0
  %87 = vmatpush1.msra.mxu0 0.0
  %88 = vmatprep.subr.mxu0 0.0
  %89 = vmatpush1.msra.mxu0 0.0
  %90 = vmatprep.subr.mxu0 0.0
  %91 = vmatpush1.msra.mxu0 0.0
  %92 = vmatprep.subr.mxu0 0.0
  %93 = vmatpush1.msra.mxu0 0.0
  %94 = vmatprep.subr.mxu0 0.0
  %95 = vmatpush1.msra.mxu0 0.0
  %96 = vmatprep.subr.mxu0 0.0
  %97 = vmatpush1.msra.mxu0 0.0
  %98 = vmatprep.subr.mxu0 0.0
  %99 = vmatpush1.msra.mxu0 0.0
  %100 = vmatprep.subr.mxu0 0.0
  %101 = vmatpush1.msra.mxu0 0.0
  %102 = vmatprep.subr.mxu0 0.0
  %103 = vmatpush1.msra.mxu0 0.0
  %104 = vmatprep.subr.mxu0 0.0
  %105 = vmatpush1.msra.mxu0 0.0
  %106 = vmatprep.subr.mxu0 0.0
  %107 = vmatpush1.msra.mxu0 0.0
  %108 = vmatprep.subr.mxu0 0.0
  %109 = vmatpush1.msra.mxu0 0.0
  %110 = vmatprep.subr.mxu0 0.0
  %111 = vmatpush1.msra.mxu0 0.0
  %112 = vmatprep.subr.mxu0 0.0
  %113 = vmatpush1.msra.mxu0 0.0
  %114 = vmatprep.subr.mxu0 0.0
  %115 = vmatpush1.msra.mxu0 0.0
  %116 = vmatprep.subr.mxu0 0.0
  %117 = vmatpush1.msra.mxu0 0.0
  %118 = vmatprep.subr.mxu0 0.0
  %119 = vmatpush1.msra.mxu0 0.0
  %120 = vmatprep.subr.mxu0 0.0
  %121 = vmatpush1.msra.mxu0 0.0
  %122 = vmatprep.subr.mxu0 0.0
  %123 = vmatpush1.msra.mxu0 0.0
  %124 = vmatprep.subr.mxu0 0.0
  %125 = vmatpush1.msra.mxu0 0.0
  %126 = vmatprep.subr.mxu0 0.0
  %127 = vmatpush1.msra.mxu0 0.0
  %128 = vmatprep.subr.mxu0 0.0
  %129 = vmatpush1.msra.mxu0 0.0
  %130 = vmatprep.subr.mxu0 0.0
  %131 = vmatpush1.msra.mxu0 0.0
  %132 = vmatprep.subr.mxu0 0.0
  %133 = vmatpush1.msra.mxu0 0.0
  %134 = vmatprep.subr.mxu0 0.0
  %135 = vmatpush1.msra.mxu0 0.0
  %136 = vmatprep.subr.mxu0 0.0
  %137 = vmatpush1.msra.mxu0 0.0
  %138 = vmatprep.subr.mxu0 0.0
  %139 = vmatpush1.msra.mxu0 0.0
  %140 = vmatprep.mubr.f32.mxu0 0.0
  %141 = vmatmul.mubr.f32.gmra.mrb[0].mxu0 %v49
  %v142 = vpop.f32.mrb[0].mxu0
  %v143 = vadd.f32 %v46, %v142
  %v144 = vpop.f32.mrb[0].mxu0
  %145 = vmatprep.mubr.f32.mxu0 0.0
  %146 = vmatmul.mubr.f32.gmra.mrb[0].mxu0 %v52
  %v147 = vpop.f32.mrb[0].mxu0
  %v148 = vadd.f32 %v46, %v147
  %v149 = vpop.f32.mrb[0].mxu0
  %150 = vmatprep.mubr.f32.mxu0 0.0
  %151 = vmatmul.mubr.f32.gmra.mrb[0].mxu0 %v55
  %v152 = vpop.f32.mrb[0].mxu0
  %v153 = vadd.f32 %v46, %v152
  %v154 = vpop.f32.mrb[0].mxu0
  %155 = vmatprep.mubr.f32.mxu0 0.0
  %156 = vmatmul.mubr.f32.gmra.mrb[0].mxu0 %v58
  %v157 = vpop.f32.mrb[0].mxu0
  %v158 = vadd.f32 %v46, %v157
  %v159 = vpop.f32.mrb[0].mxu0
  %160 = vmatprep.mubr.f32.mxu0 0.0
  %161 = vmatmul.mubr.f32.gmra.mrb[0].mxu0 %v61
  %v162 = vpop.f32.mrb[0].mxu0
  %v163 = vadd.f32 %v46, %v162
  %v164 = vpop.f32.mrb[0].mxu0
  %165 = vmatprep.mubr.f32.mxu0 0.0
  %166 = vmatmul.mubr.f32.gmra.mrb[0].mxu0 %v64
  %v167 = vpop.f32.mrb[0].mxu0
  %v168 = vadd.f32 %v46, %v167
  %v169 = vpop.f32.mrb[0].mxu0
  %170 = vmatprep.mubr.f32.mxu0 0.0
  %171 = vmatmul.mubr.f32.gmra.mrb[0].mxu0 %v67
  %v172 = vpop.f32.mrb[0].mxu0
  %v173 = vadd.f32 %v46, %v172
  %v174 = vpop.f32.mrb[0].mxu0
  %175 = vmatprep.mubr.f32.mxu0 0.0
  %176 = vmatmul.mubr.f32.gmra.mrb[0].mxu0 %v70
  %v177 = vpop.f32.mrb[0].mxu0
  %v178 = vadd.f32 %v46, %v177
  %v179 = vpop.f32.mrb[0].mxu0
  %180 = vdwg.mxu0
  %v185 = vunpack.c.l.b16 %v15
  %v186 = vunpack.c.l.b16 %v16
  %v187 = vunpack.c.l.b16 %v17
  %v188 = vunpack.c.l.b16 %v18
  %v189 = vpack.c.b16 %v186, %v185
  %v190 = vpack.c.b16 %v188, %v187
  %vm193 = vcmask 261120
  %v195 = vsel %vm193, 0, 0
  %197 = vmatprep.subr.bf16.mxu0 0
  %198 = vmatpush1.bf16.msra.mxu0 %v189
  %199 = vmatprep.subr.bf16.mxu0 0
  %200 = vmatpush1.bf16.msra.mxu0 %v190
  %201 = vmatprep.subr.bf16.mxu0 0
  %202 = vmatpush1.bf16.msra.mxu0 0
  %203 = vmatprep.subr.bf16.mxu0 0
  %204 = vmatpush1.bf16.msra.mxu0 0
  %205 = vmatprep.subr.bf16.mxu0 0
  %206 = vmatpush1.bf16.msra.mxu0 0
  %207 = vmatprep.subr.bf16.mxu0 0
  %208 = vmatpush1.bf16.msra.mxu0 0
  %209 = vmatprep.subr.bf16.mxu0 0
  %210 = vmatpush1.bf16.msra.mxu0 0
  %211 = vmatprep.subr.bf16.mxu0 0
  %212 = vmatpush1.bf16.msra.mxu0 0
  %213 = vmatprep.subr.bf16.mxu0 0
  %214 = vmatpush1.bf16.msra.mxu0 0
  %215 = vmatprep.subr.bf16.mxu0 0
  %216 = vmatpush1.bf16.msra.mxu0 0
  %217 = vmatprep.subr.bf16.mxu0 0
  %218 = vmatpush1.bf16.msra.mxu0 0
  %219 = vmatprep.subr.bf16.mxu0 0
  %220 = vmatpush1.bf16.msra.mxu0 0
  %221 = vmatprep.subr.bf16.mxu0 0
  %222 = vmatpush1.bf16.msra.mxu0 0
  %223 = vmatprep.subr.bf16.mxu0 0
  %224 = vmatpush1.bf16.msra.mxu0 0
  %225 = vmatprep.subr.bf16.mxu0 0
  %226 = vmatpush1.bf16.msra.mxu0 0
  %227 = vmatprep.subr.bf16.mxu0 0
  %228 = vmatpush1.bf16.msra.mxu0 0
  %229 = vmatprep.mubr.bf16.mxu0 0
  %230 = vmatmul.mubr.bf16.gmra.mrb[0].mxu0 %v195
  %v231 = vpop.f32.mrb[0].mxu0
  %v232 = vadd.f32 0.0, %v231
  %v233 = vpop.f32.mrb[0].mxu0
  %v234 = vpop.f32.mrb[0].mxu0
  %v235 = vpop.f32.mrb[0].mxu0
  %236 = vdwg.mxu0
  %v237 = vadd.f32 %v143, %v232
  %v238 = vxor.u32 %v237, 2147483648
  %v239 = vmul.f32 %v238, 1.442695
  %v240 = vpow.pop %v239
  %v241 = vadd.f32 %v240, 1.0
  %v242 = vrcp.pop %v241
  %v243 = vmul.f32 1.0, %v242
  %v244 = vmul.f32 %v243, 2.0
  %v245 = vsub.f32 %v244, 1.0
  %v246 = vmul.f32 %v243, 0.0
  %248 = vrot.lane.b32.xlu0 %v245, 64
  %v249 = vpop.permute.xlu0 %248
  %v251 = vmul.f32 %v243, %v249
  %253 = vrot.lane.b32.xlu0 %v251, 32
  %v254 = vpop.permute.xlu0 %253
  %v256 = vadd.f32 %v246, %v254
  %v257 = vtanh.pop %v256
  %259 = vrot.lane.b32.xlu0 %v257, 64
  %v260 = vpop.permute.xlu0 %259
  %v262 = vmul.f32 %v243, %v260
  %v263 = vpack.c.bf16 %v262, %v262
  %265 = vrot.lane.b32.xlu0 %v263, 32
  %v266 = vpop.permute.xlu0 %265
  %v268 = vsel %vm193, %v266, 0
  %270 = vmatprep.subr.bf16.mxu0 0
  %271 = vmatpush1.bf16.msra.mxu0 %v189
  %272 = vmatprep.subr.bf16.mxu0 0
  %273 = vmatpush1.bf16.msra.mxu0 %v190
  %274 = vmatprep.subr.bf16.mxu0 0
  %275 = vmatpush1.bf16.msra.mxu0 0
  %276 = vmatprep.subr.bf16.mxu0 0
  %277 = vmatpush1.bf16.msra.mxu0 0
  %278 = vmatprep.subr.bf16.mxu0 0
  %279 = vmatpush1.bf16.msra.mxu0 0
  %280 = vmatprep.subr.bf16.mxu0 0
  %281 = vmatpush1.bf16.msra.mxu0 0
  %282 = vmatprep.subr.bf16.mxu0 0
  %283 = vmatpush1.bf16.msra.mxu0 0
  %284 = vmatprep.subr.bf16.mxu0 0
  %285 = vmatpush1.bf16.msra.mxu0 0
  %286 = vmatprep.subr.bf16.mxu0 0
  %287 = vmatpush1.bf16.msra.mxu0 0
  %288 = vmatprep.subr.bf16.mxu0 0
  %289 = vmatpush1.bf16.msra.mxu0 0
  %290 = vmatprep.subr.bf16.mxu0 0
  %291 = vmatpush1.bf16.msra.mxu0 0
  %292 = vmatprep.subr.bf16.mxu0 0
  %293 = vmatpush1.bf16.msra.mxu0 0
  %294 = vmatprep.subr.bf16.mxu0 0
  %295 = vmatpush1.bf16.msra.mxu0 0
  %296 = vmatprep.subr.bf16.mxu0 0
  %297 = vmatpush1.bf16.msra.mxu0 0
  %298 = vmatprep.subr.bf16.mxu0 0
  %299 = vmatpush1.bf16.msra.mxu0 0
  %300 = vmatprep.subr.bf16.mxu0 0
  %301 = vmatpush1.bf16.msra.mxu0 0
  %302 = vmatprep.mubr.bf16.mxu0 0
  %303 = vmatmul.mubr.bf16.gmra.mrb[0].mxu0 %v268
  %v304 = vpop.f32.mrb[0].mxu0
  %v305 = vadd.f32 0.0, %v304
  %v306 = vpop.f32.mrb[0].mxu0
  %v307 = vpop.f32.mrb[0].mxu0
  %v308 = vpop.f32.mrb[0].mxu0
  %309 = vdwg.mxu0
  %v310 = vadd.f32 %v148, %v305
  %v311 = vxor.u32 %v310, 2147483648
  %v312 = vmul.f32 %v311, 1.442695
  %v313 = vpow.pop %v312
  %v314 = vadd.f32 %v313, 1.0
  %v315 = vrcp.pop %v314
  %v316 = vmul.f32 1.0, %v315
  %v317 = vmul.f32 %v316, 2.0
  %v318 = vsub.f32 %v317, 1.0
  %v319 = vmul.f32 %v316, %v256
  %321 = vrot.lane.b32.xlu0 %v318, 64
  %v322 = vpop.permute.xlu0 %321
  %v324 = vmul.f32 %v316, %v322
  %326 = vrot.lane.b32.xlu0 %v324, 32
  %v327 = vpop.permute.xlu0 %326
  %v329 = vadd.f32 %v319, %v327
  %v330 = vtanh.pop %v329
  %332 = vrot.lane.b32.xlu0 %v330, 64
  %v333 = vpop.permute.xlu0 %332
  %v335 = vmul.f32 %v316, %v333
  %v336 = vpack.c.bf16 %v335, %v335
  %338 = vrot.lane.b32.xlu0 %v336, 32
  %v339 = vpop.permute.xlu0 %338
  %v341 = vsel %vm193, %v339, 0
  %343 = vmatprep.subr.bf16.mxu0 0
  %344 = vmatpush1.bf16.msra.mxu0 %v189
  %345 = vmatprep.subr.bf16.mxu0 0
  %346 = vmatpush1.bf16.msra.mxu0 %v190
  %347 = vmatprep.subr.bf16.mxu0 0
  %348 = vmatpush1.bf16.msra.mxu0 0
  %349 = vmatprep.subr.bf16.mxu0 0
  %350 = vmatpush1.bf16.msra.mxu0 0
  %351 = vmatprep.subr.bf16.mxu0 0
  %352 = vmatpush1.bf16.msra.mxu0 0
  %353 = vmatprep.subr.bf16.mxu0 0
  %354 = vmatpush1.bf16.msra.mxu0 0
  %355 = vmatprep.subr.bf16.mxu0 0
  %356 = vmatpush1.bf16.msra.mxu0 0
  %357 = vmatprep.subr.bf16.mxu0 0
  %358 = vmatpush1.bf16.msra.mxu0 0
  %359 = vmatprep.subr.bf16.mxu0 0
  %360 = vmatpush1.bf16.msra.mxu0 0
  %361 = vmatprep.subr.bf16.mxu0 0
  %362 = vmatpush1.bf16.msra.mxu0 0
  %363 = vmatprep.subr.bf16.mxu0 0
  %364 = vmatpush1.bf16.msra.mxu0 0
  %365 = vmatprep.subr.bf16.mxu0 0
  %366 = vmatpush1.bf16.msra.mxu0 0
  %367 = vmatprep.subr.bf16.mxu0 0
  %368 = vmatpush1.bf16.msra.mxu0 0
  %369 = vmatprep.subr.bf16.mxu0 0
  %370 = vmatpush1.bf16.msra.mxu0 0
  %371 = vmatprep.subr.bf16.mxu0 0
  %372 = vmatpush1.bf16.msra.mxu0 0
  %373 = vmatprep.subr.bf16.mxu0 0
  %374 = vmatpush1.bf16.msra.mxu0 0
  %375 = vmatprep.mubr.bf16.mxu0 0
  %376 = vmatmul.mubr.bf16.gmra.mrb[0].mxu0 %v341
  %v377 = vpop.f32.mrb[0].mxu0
  %v378 = vadd.f32 0.0, %v377
  %v379 = vpop.f32.mrb[0].mxu0
  %v380 = vpop.f32.mrb[0].mxu0
  %v381 = vpop.f32.mrb[0].mxu0
  %382 = vdwg.mxu0
  %v383 = vadd.f32 %v153, %v378
  %v384 = vxor.u32 %v383, 2147483648
  %v385 = vmul.f32 %v384, 1.442695
  %v386 = vpow.pop %v385
  %v387 = vadd.f32 %v386, 1.0
  %v388 = vrcp.pop %v387
  %v389 = vmul.f32 1.0, %v388
  %v390 = vmul.f32 %v389, 2.0
  %v391 = vsub.f32 %v390, 1.0
  %v392 = vmul.f32 %v389, %v329
  %394 = vrot.lane.b32.xlu0 %v391, 64
  %v395 = vpop.permute.xlu0 %394
  %v397 = vmul.f32 %v389, %v395
  %399 = vrot.lane.b32.xlu0 %v397, 32
  %v400 = vpop.permute.xlu0 %399
  %v402 = vadd.f32 %v392, %v400
  %v403 = vtanh.pop %v402
  %405 = vrot.lane.b32.xlu0 %v403, 64
  %v406 = vpop.permute.xlu0 %405
  %v408 = vmul.f32 %v389, %v406
  %v409 = vpack.c.bf16 %v408, %v408
  %411 = vrot.lane.b32.xlu0 %v409, 32
  %v412 = vpop.permute.xlu0 %411
  %v414 = vsel %vm193, %v412, 0
  %416 = vmatprep.subr.bf16.mxu0 0
  %417 = vmatpush1.bf16.msra.mxu0 %v189
  %418 = vmatprep.subr.bf16.mxu0 0
  %419 = vmatpush1.bf16.msra.mxu0 %v190
  %420 = vmatprep.subr.bf16.mxu0 0
  %421 = vmatpush1.bf16.msra.mxu0 0
  %422 = vmatprep.subr.bf16.mxu0 0
  %423 = vmatpush1.bf16.msra.mxu0 0
  %424 = vmatprep.subr.bf16.mxu0 0
  %425 = vmatpush1.bf16.msra.mxu0 0
  %426 = vmatprep.subr.bf16.mxu0 0
  %427 = vmatpush1.bf16.msra.mxu0 0
  %428 = vmatprep.subr.bf16.mxu0 0
  %429 = vmatpush1.bf16.msra.mxu0 0
  %430 = vmatprep.subr.bf16.mxu0 0
  %431 = vmatpush1.bf16.msra.mxu0 0
  %432 = vmatprep.subr.bf16.mxu0 0
  %433 = vmatpush1.bf16.msra.mxu0 0
  %434 = vmatprep.subr.bf16.mxu0 0
  %435 = vmatpush1.bf16.msra.mxu0 0
  %436 = vmatprep.subr.bf16.mxu0 0
  %437 = vmatpush1.bf16.msra.mxu0 0
  %438 = vmatprep.subr.bf16.mxu0 0
  %439 = vmatpush1.bf16.msra.mxu0 0
  %440 = vmatprep.subr.bf16.mxu0 0
  %441 = vmatpush1.bf16.msra.mxu0 0
  %442 = vmatprep.subr.bf16.mxu0 0
  %443 = vmatpush1.bf16.msra.mxu0 0
  %444 = vmatprep.subr.bf16.mxu0 0
  %445 = vmatpush1.bf16.msra.mxu0 0
  %446 = vmatprep.subr.bf16.mxu0 0
  %447 = vmatpush1.bf16.msra.mxu0 0
  %448 = vmatprep.mubr.bf16.mxu0 0
  %449 = vmatmul.mubr.bf16.gmra.mrb[0].mxu0 %v414
  %v450 = vpop.f32.mrb[0].mxu0
  %v451 = vadd.f32 0.0, %v450
  %v452 = vpop.f32.mrb[0].mxu0
  %v453 = vpop.f32.mrb[0].mxu0
  %v454 = vpop.f32.mrb[0].mxu0
  %455 = vdwg.mxu0
  %v456 = vadd.f32 %v158, %v451
  %v457 = vxor.u32 %v456, 2147483648
  %v458 = vmul.f32 %v457, 1.442695
  %v459 = vpow.pop %v458
  %v460 = vadd.f32 %v459, 1.0
  %v461 = vrcp.pop %v460
  %v462 = vmul.f32 1.0, %v461
  %v463 = vmul.f32 %v462, 2.0
  %v464 = vsub.f32 %v463, 1.0
  %v465 = vmul.f32 %v462, %v402
  %467 = vrot.lane.b32.xlu0 %v464, 64
  %v468 = vpop.permute.xlu0 %467
  %v470 = vmul.f32 %v462, %v468
  %472 = vrot.lane.b32.xlu0 %v470, 32
  %v473 = vpop.permute.xlu0 %472
  %v475 = vadd.f32 %v465, %v473
  %v476 = vtanh.pop %v475
  %478 = vrot.lane.b32.xlu0 %v476, 64
  %v479 = vpop.permute.xlu0 %478
  %v481 = vmul.f32 %v462, %v479
  %v482 = vpack.c.bf16 %v481, %v481
  %484 = vrot.lane.b32.xlu0 %v482, 32
  %v485 = vpop.permute.xlu0 %484
  %v487 = vsel %vm193, %v485, 0
  %489 = vmatprep.subr.bf16.mxu0 0
  %490 = vmatpush1.bf16.msra.mxu0 %v189
  %491 = vmatprep.subr.bf16.mxu0 0
  %492 = vmatpush1.bf16.msra.mxu0 %v190
  %493 = vmatprep.subr.bf16.mxu0 0
  %494 = vmatpush1.bf16.msra.mxu0 0
  %495 = vmatprep.subr.bf16.mxu0 0
  %496 = vmatpush1.bf16.msra.mxu0 0
  %497 = vmatprep.subr.bf16.mxu0 0
  %498 = vmatpush1.bf16.msra.mxu0 0
  %499 = vmatprep.subr.bf16.mxu0 0
  %500 = vmatpush1.bf16.msra.mxu0 0
  %501 = vmatprep.subr.bf16.mxu0 0
  %502 = vmatpush1.bf16.msra.mxu0 0
  %503 = vmatprep.subr.bf16.mxu0 0
  %504 = vmatpush1.bf16.msra.mxu0 0
  %505 = vmatprep.subr.bf16.mxu0 0
  %506 = vmatpush1.bf16.msra.mxu0 0
  %507 = vmatprep.subr.bf16.mxu0 0
  %508 = vmatpush1.bf16.msra.mxu0 0
  %509 = vmatprep.subr.bf16.mxu0 0
  %510 = vmatpush1.bf16.msra.mxu0 0
  %511 = vmatprep.subr.bf16.mxu0 0
  %512 = vmatpush1.bf16.msra.mxu0 0
  %513 = vmatprep.subr.bf16.mxu0 0
  %514 = vmatpush1.bf16.msra.mxu0 0
  %515 = vmatprep.subr.bf16.mxu0 0
  %516 = vmatpush1.bf16.msra.mxu0 0
  %517 = vmatprep.subr.bf16.mxu0 0
  %518 = vmatpush1.bf16.msra.mxu0 0
  %519 = vmatprep.subr.bf16.mxu0 0
  %520 = vmatpush1.bf16.msra.mxu0 0
  %521 = vmatprep.mubr.bf16.mxu0 0
  %522 = vmatmul.mubr.bf16.gmra.mrb[0].mxu0 %v487
  %v523 = vpop.f32.mrb[0].mxu0
  %v524 = vadd.f32 0.0, %v523
  %v525 = vpop.f32.mrb[0].mxu0
  %v526 = vpop.f32.mrb[0].mxu0
  %v527 = vpop.f32.mrb[0].mxu0
  %528 = vdwg.mxu0
  %v529 = vadd.f32 %v163, %v524
  %v530 = vxor.u32 %v529, 2147483648
  %v531 = vmul.f32 %v530, 1.442695
  %v532 = vpow.pop %v531
  %v533 = vadd.f32 %v532, 1.0
  %v534 = vrcp.pop %v533
  %v535 = vmul.f32 1.0, %v534
  %v536 = vmul.f32 %v535, 2.0
  %v537 = vsub.f32 %v536, 1.0
  %v538 = vmul.f32 %v535, %v475
  %540 = vrot.lane.b32.xlu0 %v537, 64
  %v541 = vpop.permute.xlu0 %540
  %v543 = vmul.f32 %v535, %v541
  %545 = vrot.lane.b32.xlu0 %v543, 32
  %v546 = vpop.permute.xlu0 %545
  %v548 = vadd.f32 %v538, %v546
  %v549 = vtanh.pop %v548
  %551 = vrot.lane.b32.xlu0 %v549, 64
  %v552 = vpop.permute.xlu0 %551
  %v554 = vmul.f32 %v535, %v552
  %v555 = vpack.c.bf16 %v554, %v554
  %557 = vrot.lane.b32.xlu0 %v555, 32
  %v558 = vpop.permute.xlu0 %557
  %v560 = vsel %vm193, %v558, 0
  %562 = vmatprep.subr.bf16.mxu0 0
  %563 = vmatpush1.bf16.msra.mxu0 %v189
  %564 = vmatprep.subr.bf16.mxu0 0
  %565 = vmatpush1.bf16.msra.mxu0 %v190
  %566 = vmatprep.subr.bf16.mxu0 0
  %567 = vmatpush1.bf16.msra.mxu0 0
  %568 = vmatprep.subr.bf16.mxu0 0
  %569 = vmatpush1.bf16.msra.mxu0 0
  %570 = vmatprep.subr.bf16.mxu0 0
  %571 = vmatpush1.bf16.msra.mxu0 0
  %572 = vmatprep.subr.bf16.mxu0 0
  %573 = vmatpush1.bf16.msra.mxu0 0
  %574 = vmatprep.subr.bf16.mxu0 0
  %575 = vmatpush1.bf16.msra.mxu0 0
  %576 = vmatprep.subr.bf16.mxu0 0
  %577 = vmatpush1.bf16.msra.mxu0 0
  %578 = vmatprep.subr.bf16.mxu0 0
  %579 = vmatpush1.bf16.msra.mxu0 0
  %580 = vmatprep.subr.bf16.mxu0 0
  %581 = vmatpush1.bf16.msra.mxu0 0
  %582 = vmatprep.subr.bf16.mxu0 0
  %583 = vmatpush1.bf16.msra.mxu0 0
  %584 = vmatprep.subr.bf16.mxu0 0
  %585 = vmatpush1.bf16.msra.mxu0 0
  %586 = vmatprep.subr.bf16.mxu0 0
  %587 = vmatpush1.bf16.msra.mxu0 0
  %588 = vmatprep.subr.bf16.mxu0 0
  %589 = vmatpush1.bf16.msra.mxu0 0
  %590 = vmatprep.subr.bf16.mxu0 0
  %591 = vmatpush1.bf16.msra.mxu0 0
  %592 = vmatprep.subr.bf16.mxu0 0
  %593 = vmatpush1.bf16.msra.mxu0 0
  %594 = vmatprep.mubr.bf16.mxu0 0
  %595 = vmatmul.mubr.bf16.gmra.mrb[0].mxu0 %v560
  %v596 = vpop.f32.mrb[0].mxu0
  %v597 = vadd.f32 0.0, %v596
  %v598 = vpop.f32.mrb[0].mxu0
  %v599 = vpop.f32.mrb[0].mxu0
  %v600 = vpop.f32.mrb[0].mxu0
  %601 = vdwg.mxu0
  %v602 = vadd.f32 %v168, %v597
  %v603 = vxor.u32 %v602, 2147483648
  %v604 = vmul.f32 %v603, 1.442695
  %v605 = vpow.pop %v604
  %v606 = vadd.f32 %v605, 1.0
  %v607 = vrcp.pop %v606
  %v608 = vmul.f32 1.0, %v607
  %v609 = vmul.f32 %v608, 2.0
  %v610 = vsub.f32 %v609, 1.0
  %v611 = vmul.f32 %v608, %v548
  %613 = vrot.lane.b32.xlu0 %v610, 64
  %v614 = vpop.permute.xlu0 %613
  %v616 = vmul.f32 %v608, %v614
  %618 = vrot.lane.b32.xlu0 %v616, 32
  %v619 = vpop.permute.xlu0 %618
  %v621 = vadd.f32 %v611, %v619
  %v622 = vtanh.pop %v621
  %624 = vrot.lane.b32.xlu0 %v622, 64
  %v625 = vpop.permute.xlu0 %624
  %v627 = vmul.f32 %v608, %v625
  %v628 = vpack.c.bf16 %v627, %v627
  %630 = vrot.lane.b32.xlu0 %v628, 32
  %v631 = vpop.permute.xlu0 %630
  %v633 = vsel %vm193, %v631, 0
  %635 = vmatprep.subr.bf16.mxu0 0
  %636 = vmatpush1.bf16.msra.mxu0 %v189
  %637 = vmatprep.subr.bf16.mxu0 0
  %638 = vmatpush1.bf16.msra.mxu0 %v190
  %639 = vmatprep.subr.bf16.mxu0 0
  %640 = vmatpush1.bf16.msra.mxu0 0
  %641 = vmatprep.subr.bf16.mxu0 0
  %642 = vmatpush1.bf16.msra.mxu0 0
  %643 = vmatprep.subr.bf16.mxu0 0
  %644 = vmatpush1.bf16.msra.mxu0 0
  %645 = vmatprep.subr.bf16.mxu0 0
  %646 = vmatpush1.bf16.msra.mxu0 0
  %647 = vmatprep.subr.bf16.mxu0 0
  %648 = vmatpush1.bf16.msra.mxu0 0
  %649 = vmatprep.subr.bf16.mxu0 0
  %650 = vmatpush1.bf16.msra.mxu0 0
  %651 = vmatprep.subr.bf16.mxu0 0
  %652 = vmatpush1.bf16.msra.mxu0 0
  %653 = vmatprep.subr.bf16.mxu0 0
  %654 = vmatpush1.bf16.msra.mxu0 0
  %655 = vmatprep.subr.bf16.mxu0 0
  %656 = vmatpush1.bf16.msra.mxu0 0
  %657 = vmatprep.subr.bf16.mxu0 0
  %658 = vmatpush1.bf16.msra.mxu0 0
  %659 = vmatprep.subr.bf16.mxu0 0
  %660 = vmatpush1.bf16.msra.mxu0 0
  %661 = vmatprep.subr.bf16.mxu0 0
  %662 = vmatpush1.bf16.msra.mxu0 0
  %663 = vmatprep.subr.bf16.mxu0 0
  %664 = vmatpush1.bf16.msra.mxu0 0
  %665 = vmatprep.subr.bf16.mxu0 0
  %666 = vmatpush1.bf16.msra.mxu0 0
  %667 = vmatprep.mubr.bf16.mxu0 0
  %668 = vmatmul.mubr.bf16.gmra.mrb[0].mxu0 %v633
  %v669 = vpop.f32.mrb[0].mxu0
  %v670 = vadd.f32 0.0, %v669
  %v671 = vpop.f32.mrb[0].mxu0
  %v672 = vpop.f32.mrb[0].mxu0
  %v673 = vpop.f32.mrb[0].mxu0
  %674 = vdwg.mxu0
  %v675 = vadd.f32 %v173, %v670
  %v676 = vxor.u32 %v675, 2147483648
  %v677 = vmul.f32 %v676, 1.442695
  %v678 = vpow.pop %v677
  %v679 = vadd.f32 %v678, 1.0
  %v680 = vrcp.pop %v679
  %v681 = vmul.f32 1.0, %v680
  %v682 = vmul.f32 %v681, 2.0
  %v683 = vsub.f32 %v682, 1.0
  %v684 = vmul.f32 %v681, %v621
  %686 = vrot.lane.b32.xlu0 %v683, 64
  %v687 = vpop.permute.xlu0 %686
  %v689 = vmul.f32 %v681, %v687
  %691 = vrot.lane.b32.xlu0 %v689, 32
  %v692 = vpop.permute.xlu0 %691
  %v694 = vadd.f32 %v684, %v692
  %v695 = vtanh.pop %v694
  %697 = vrot.lane.b32.xlu0 %v695, 64
  %v698 = vpop.permute.xlu0 %697
  %v700 = vmul.f32 %v681, %v698
  %v701 = vpack.c.bf16 %v700, %v700
  %703 = vrot.lane.b32.xlu0 %v701, 32
  %v704 = vpop.permute.xlu0 %703
  %v706 = vsel %vm193, %v704, 0
  %708 = vmatprep.subr.bf16.mxu0 0
  %709 = vmatpush1.bf16.msra.mxu0 %v189
  %710 = vmatprep.subr.bf16.mxu0 0
  %711 = vmatpush1.bf16.msra.mxu0 %v190
  %712 = vmatprep.subr.bf16.mxu0 0
  %713 = vmatpush1.bf16.msra.mxu0 0
  %714 = vmatprep.subr.bf16.mxu0 0
  %715 = vmatpush1.bf16.msra.mxu0 0
  %716 = vmatprep.subr.bf16.mxu0 0
  %717 = vmatpush1.bf16.msra.mxu0 0
  %718 = vmatprep.subr.bf16.mxu0 0
  %719 = vmatpush1.bf16.msra.mxu0 0
  %720 = vmatprep.subr.bf16.mxu0 0
  %721 = vmatpush1.bf16.msra.mxu0 0
  %722 = vmatprep.subr.bf16.mxu0 0
  %723 = vmatpush1.bf16.msra.mxu0 0
  %724 = vmatprep.subr.bf16.mxu0 0
  %725 = vmatpush1.bf16.msra.mxu0 0
  %726 = vmatprep.subr.bf16.mxu0 0
  %727 = vmatpush1.bf16.msra.mxu0 0
  %728 = vmatprep.subr.bf16.mxu0 0
  %729 = vmatpush1.bf16.msra.mxu0 0
  %730 = vmatprep.subr.bf16.mxu0 0
  %731 = vmatpush1.bf16.msra.mxu0 0
  %732 = vmatprep.subr.bf16.mxu0 0
  %733 = vmatpush1.bf16.msra.mxu0 0
  %734 = vmatprep.subr.bf16.mxu0 0
  %735 = vmatpush1.bf16.msra.mxu0 0
  %736 = vmatprep.subr.bf16.mxu0 0
  %737 = vmatpush1.bf16.msra.mxu0 0
  %738 = vmatprep.subr.bf16.mxu0 0
  %739 = vmatpush1.bf16.msra.mxu0 0
  %740 = vmatprep.mubr.bf16.mxu0 0
  %741 = vmatmul.mubr.bf16.gmra.mrb[0].mxu0 %v706
  %v742 = vpop.f32.mrb[0].mxu0
  %v743 = vadd.f32 0.0, %v742
  %v744 = vpop.f32.mrb[0].mxu0
  %v745 = vpop.f32.mrb[0].mxu0
  %v746 = vpop.f32.mrb[0].mxu0
  %747 = vdwg.mxu0
  %v748 = vadd.f32 %v178, %v743
  %v749 = vxor.u32 %v748, 2147483648
  %v750 = vmul.f32 %v749, 1.442695
  %v751 = vpow.pop %v750
  %v752 = vadd.f32 %v751, 1.0
  %v753 = vrcp.pop %v752
  %v754 = vmul.f32 1.0, %v753
  %v755 = vmul.f32 %v754, 2.0
  %v756 = vsub.f32 %v755, 1.0
  %v757 = vmul.f32 %v754, %v694
  %759 = vrot.lane.b32.xlu0 %v756, 64
  %v760 = vpop.permute.xlu0 %759
  %v762 = vmul.f32 %v754, %v760
  %764 = vrot.lane.b32.xlu0 %v762, 32
  %v765 = vpop.permute.xlu0 %764
  %v767 = vadd.f32 %v757, %v765
  %v768 = vtanh.pop %v767
  %770 = vrot.lane.b32.xlu0 %v768, 64
  %v771 = vpop.permute.xlu0 %770
  %v773 = vmul.f32 %v754, %v771
  %v774 = vlaneseq
  %v775 = vshrl.u32 %v774, 7
  %v776 = vsub.s32 0, %v775
  %v777 = vrot.slane %v25, %v776
  %779 = vrot.lane.b32.xlu0 %v773, 32
  %v780 = vpop.permute.xlu0 %779
  %v781 = vsel %vm193, %v780, 0
  %783 = vmatprep.subr.mxu0 0.0
  %784 = vmatpush1.msra.mxu0 %v29
  %785 = vmatprep.subr.mxu0 0.0
  %786 = vmatpush1.msra.mxu0 %v30
  %787 = vmatprep.subr.mxu0 0.0
  %788 = vmatpush1.msra.mxu0 %v31
  %789 = vmatprep.subr.mxu0 0.0
  %790 = vmatpush1.msra.mxu0 %v32
  %791 = vmatprep.subr.mxu0 0.0
  %792 = vmatpush1.msra.mxu0 0.0
  %793 = vmatprep.subr.mxu0 0.0
  %794 = vmatpush1.msra.mxu0 0.0
  %795 = vmatprep.subr.mxu0 0.0
  %796 = vmatpush1.msra.mxu0 0.0
  %797 = vmatprep.subr.mxu0 0.0
  %798 = vmatpush1.msra.mxu0 0.0
  %799 = vmatprep.subr.mxu0 0.0
  %800 = vmatpush1.msra.mxu0 0.0
  %801 = vmatprep.subr.mxu0 0.0
  %802 = vmatpush1.msra.mxu0 0.0
  %803 = vmatprep.subr.mxu0 0.0
  %804 = vmatpush1.msra.mxu0 0.0
  %805 = vmatprep.subr.mxu0 0.0
  %806 = vmatpush1.msra.mxu0 0.0
  %807 = vmatprep.subr.mxu0 0.0
  %808 = vmatpush1.msra.mxu0 0.0
  %809 = vmatprep.subr.mxu0 0.0
  %810 = vmatpush1.msra.mxu0 0.0
  %811 = vmatprep.subr.mxu0 0.0
  %812 = vmatpush1.msra.mxu0 0.0
  %813 = vmatprep.subr.mxu0 0.0
  %814 = vmatpush1.msra.mxu0 0.0
  %815 = vmatprep.subr.mxu0 0.0
  %816 = vmatpush1.msra.mxu0 0.0
  %817 = vmatprep.subr.mxu0 0.0
  %818 = vmatpush1.msra.mxu0 0.0
  %819 = vmatprep.subr.mxu0 0.0
  %820 = vmatpush1.msra.mxu0 0.0
  %821 = vmatprep.subr.mxu0 0.0
  %822 = vmatpush1.msra.mxu0 0.0
  %823 = vmatprep.subr.mxu0 0.0
  %824 = vmatpush1.msra.mxu0 0.0
  %825 = vmatprep.subr.mxu0 0.0
  %826 = vmatpush1.msra.mxu0 0.0
  %827 = vmatprep.subr.mxu0 0.0
  %828 = vmatpush1.msra.mxu0 0.0
  %829 = vmatprep.subr.mxu0 0.0
  %830 = vmatpush1.msra.mxu0 0.0
  %831 = vmatprep.subr.mxu0 0.0
  %832 = vmatpush1.msra.mxu0 0.0
  %833 = vmatprep.subr.mxu0 0.0
  %834 = vmatpush1.msra.mxu0 0.0
  %835 = vmatprep.subr.mxu0 0.0
  %836 = vmatpush1.msra.mxu0 0.0
  %837 = vmatprep.subr.mxu0 0.0
  %838 = vmatpush1.msra.mxu0 0.0
  %839 = vmatprep.subr.mxu0 0.0
  %840 = vmatpush1.msra.mxu0 0.0
  %841 = vmatprep.subr.mxu0 0.0
  %842 = vmatpush1.msra.mxu0 0.0
  %843 = vmatprep.subr.mxu0 0.0
  %844 = vmatpush1.msra.mxu0 0.0
  %845 = vmatprep.subr.mxu0 0.0
  %846 = vmatpush1.msra.mxu0 0.0
  %847 = vmatprep.mubr.f32.mxu0 0.0
  %848 = vmatmul.mubr.f32.gmra.mrb[0].mxu0 %v781
  %v849 = vpop.f32.mrb[0].mxu0
  %v850 = vadd.f32 %v777, %v849
  %v851 = vpop.f32.mrb[0].mxu0
  %852 = vdwg.mxu0
  %v853 = vlaneseq
  %v854 = vshrl.u32 %v853, 7
  %v855 = vsub.s32 0, %v854
  %v856 = vrot.slane %v26, %v855
  %vm857 = vcmask 130048
  %v859 = vsel %vm857, %v850, 0
  %861 = vmatprep.subr.mxu0 0.0
  %862 = vmatpush1.msra.mxu0 %v33
  %863 = vmatprep.subr.mxu0 0.0
  %864 = vmatpush1.msra.mxu0 %v34
  %865 = vmatprep.subr.mxu0 0.0
  %866 = vmatpush1.msra.mxu0 0.0
  %867 = vmatprep.subr.mxu0 0.0
  %868 = vmatpush1.msra.mxu0 0.0
  %869 = vmatprep.subr.mxu0 0.0
  %870 = vmatpush1.msra.mxu0 0.0
  %871 = vmatprep.subr.mxu0 0.0
  %872 = vmatpush1.msra.mxu0 0.0
  %873 = vmatprep.subr.mxu0 0.0
  %874 = vmatpush1.msra.mxu0 0.0
  %875 = vmatprep.subr.mxu0 0.0
  %876 = vmatpush1.msra.mxu0 0.0
  %877 = vmatprep.subr.mxu0 0.0
  %878 = vmatpush1.msra.mxu0 0.0
  %879 = vmatprep.subr.mxu0 0.0
  %880 = vmatpush1.msra.mxu0 0.0
  %881 = vmatprep.subr.mxu0 0.0
  %882 = vmatpush1.msra.mxu0 0.0
  %883 = vmatprep.subr.mxu0 0.0
  %884 = vmatpush1.msra.mxu0 0.0
  %885 = vmatprep.subr.mxu0 0.0
  %886 = vmatpush1.msra.mxu0 0.0
  %887 = vmatprep.subr.mxu0 0.0
  %888 = vmatpush1.msra.mxu0 0.0
  %889 = vmatprep.subr.mxu0 0.0
  %890 = vmatpush1.msra.mxu0 0.0
  %891 = vmatprep.subr.mxu0 0.0
  %892 = vmatpush1.msra.mxu0 0.0
  %893 = vmatprep.subr.mxu0 0.0
  %894 = vmatpush1.msra.mxu0 0.0
  %895 = vmatprep.subr.mxu0 0.0
  %896 = vmatpush1.msra.mxu0 0.0
  %897 = vmatprep.subr.mxu0 0.0
  %898 = vmatpush1.msra.mxu0 0.0
  %899 = vmatprep.subr.mxu0 0.0
  %900 = vmatpush1.msra.mxu0 0.0
  %901 = vmatprep.subr.mxu0 0.0
  %902 = vmatpush1.msra.mxu0 0.0
  %903 = vmatprep.subr.mxu0 0.0
  %904 = vmatpush1.msra.mxu0 0.0
  %905 = vmatprep.subr.mxu0 0.0
  %906 = vmatpush1.msra.mxu0 0.0
  %907 = vmatprep.subr.mxu0 0.0
  %908 = vmatpush1.msra.mxu0 0.0
  %909 = vmatprep.subr.mxu0 0.0
  %910 = vmatpush1.msra.mxu0 0.0
  %911 = vmatprep.subr.mxu0 0.0
  %912 = vmatpush1.msra.mxu0 0.0
  %913 = vmatprep.subr.mxu0 0.0
  %914 = vmatpush1.msra.mxu0 0.0
  %915 = vmatprep.subr.mxu0 0.0
  %916 = vmatpush1.msra.mxu0 0.0
  %917 = vmatprep.subr.mxu0 0.0
  %918 = vmatpush1.msra.mxu0 0.0
  %919 = vmatprep.subr.mxu0 0.0
  %920 = vmatpush1.msra.mxu0 0.0
  %921 = vmatprep.subr.mxu0 0.0
  %922 = vmatpush1.msra.mxu0 0.0
  %923 = vmatprep.subr.mxu0 0.0
  %924 = vmatpush1.msra.mxu0 0.0
  %925 = vmatprep.mubr.f32.mxu0 0.0
  %926 = vmatmul.mubr.f32.gmra.mrb[0].mxu0 %v859
  %v927 = vpop.f32.mrb[0].mxu0
  %v928 = vadd.f32 %v856, %v927
  %v929 = vpop.f32.mrb[0].mxu0
  %930 = vdwg.mxu0
  %v931 = vpack.c.bf16 %v928, %v928
  %v932 = vlaneseq
  %v933 = vshrl.u32 %v932, 7
  %v934 = vsub.s32 0, %v933
  %v935 = vrot.slane %v24, %v934
  %v940 = vunpack.c.l.b16 %v19
  %v941 = vunpack.c.l.b16 %v20
  %v942 = vunpack.c.l.b16 %v21
  %v943 = vunpack.c.l.b16 %v22
  %v944 = vpack.c.b16 %v941, %v940
  %v945 = vpack.c.b16 %v943, %v942
  %v949 = vsel %vm193, %v931, 0
  %951 = vmatprep.subr.bf16.mxu0 0
  %952 = vmatpush1.bf16.msra.mxu0 %v944
  %953 = vmatprep.subr.bf16.mxu0 0
  %954 = vmatpush1.bf16.msra.mxu0 %v945
  %955 = vmatprep.subr.bf16.mxu0 0
  %956 = vmatpush1.bf16.msra.mxu0 0
  %957 = vmatprep.subr.bf16.mxu0 0
  %958 = vmatpush1.bf16.msra.mxu0 0
  %959 = vmatprep.subr.bf16.mxu0 0
  %960 = vmatpush1.bf16.msra.mxu0 0
  %961 = vmatprep.subr.bf16.mxu0 0
  %962 = vmatpush1.bf16.msra.mxu0 0
  %963 = vmatprep.subr.bf16.mxu0 0
  %964 = vmatpush1.bf16.msra.mxu0 0
  %965 = vmatprep.subr.bf16.mxu0 0
  %966 = vmatpush1.bf16.msra.mxu0 0
  %967 = vmatprep.subr.bf16.mxu0 0
  %968 = vmatpush1.bf16.msra.mxu0 0
  %969 = vmatprep.subr.bf16.mxu0 0
  %970 = vmatpush1.bf16.msra.mxu0 0
  %971 = vmatprep.subr.bf16.mxu0 0
  %972 = vmatpush1.bf16.msra.mxu0 0
  %973 = vmatprep.subr.bf16.mxu0 0
  %974 = vmatpush1.bf16.msra.mxu0 0
  %975 = vmatprep.subr.bf16.mxu0 0
  %976 = vmatpush1.bf16.msra.mxu0 0
  %977 = vmatprep.subr.bf16.mxu0 0
  %978 = vmatpush1.bf16.msra.mxu0 0
  %979 = vmatprep.subr.bf16.mxu0 0
  %980 = vmatpush1.bf16.msra.mxu0 0
  %981 = vmatprep.subr.bf16.mxu0 0
  %982 = vmatpush1.bf16.msra.mxu0 0
  %983 = vmatprep.mubr.bf16.mxu0 0
  %984 = vmatmul.mubr.bf16.gmra.mrb[0].mxu0 %v949
  %v985 = vpop.f32.mrb[0].mxu0
  %v986 = vadd.f32 %v935, %v985
  %v987 = vpop.f32.mrb[0].mxu0
  %v988 = vpop.f32.mrb[0].mxu0
  %v989 = vpop.f32.mrb[0].mxu0
  %990 = vdwg.mxu0
  %v991 = vxor.u32 %v986, 2147483648
  %v992 = vmul.f32 %v991, 1.442695
  %v993 = vpow.pop %v992
  %v994 = vadd.f32 %v993, 1.0
  %v995 = vrcp.pop %v994
  %v996 = vmul.f32 1.0, %v995
  %v997 = vmul.f32 %v996, 2.0
  %v998 = vsub.f32 %v997, 1.0
  %v999 = vmul.f32 %v996, 0.0
  %1001 = vrot.lane.b32.xlu0 %v998, 64
  %v1002 = vpop.permute.xlu0 %1001
  %v1004 = vmul.f32 %v996, %v1002
  %1006 = vrot.lane.b32.xlu0 %v1004, 32
  %v1007 = vpop.permute.xlu0 %1006
  %v1009 = vadd.f32 %v999, %v1007
  %v1010 = vtanh.pop %v1009
  %1012 = vrot.lane.b32.xlu0 %v1010, 64
  %v1013 = vpop.permute.xlu0 %1012
  %v1015 = vmul.f32 %v996, %v1013
  %v1016 = vlaneseq
  %v1017 = vshrl.u32 %v1016, 7
  %v1018 = vsub.s32 0, %v1017
  %v1019 = vrot.slane %v27, %v1018
  %1021 = vrot.lane.b32.xlu0 %v1019, 96
  %v1022 = vpop.permute.xlu0 %1021
  %v1024 = vmul.f32 %v1015, %v1022
  %1026 = vrot.lane.b32.xlu0 %v1024, 32
  %v1027 = vpop.permute.xlu0 %1026
  %v1029 = vsel %vm193, %v1027, 0.0
  %1030 = vadd.xlane.f32.xlu0 %v1029
  %v1031 = vpop.xlane.xlu0 %1030
  %v1032 = vadd.f32 %v1031, %v1019
  %v1033 = vpack.c.bf16 %v1015, %v1015
  %1035 = vrot.lane.b32.xlu0 %v1033, 32
  %v1036 = vpop.permute.xlu0 %1035
  %v1038 = vsel %vm193, %v1036, 0
  %1040 = vmatprep.subr.bf16.mxu0 0
  %1041 = vmatpush1.bf16.msra.mxu0 %v944
  %1042 = vmatprep.subr.bf16.mxu0 0
  %1043 = vmatpush1.bf16.msra.mxu0 %v945
  %1044 = vmatprep.subr.bf16.mxu0 0
  %1045 = vmatpush1.bf16.msra.mxu0 0
  %1046 = vmatprep.subr.bf16.mxu0 0
  %1047 = vmatpush1.bf16.msra.mxu0 0
  %1048 = vmatprep.subr.bf16.mxu0 0
  %1049 = vmatpush1.bf16.msra.mxu0 0
  %1050 = vmatprep.subr.bf16.mxu0 0
  %1051 = vmatpush1.bf16.msra.mxu0 0
  %1052 = vmatprep.subr.bf16.mxu0 0
  %1053 = vmatpush1.bf16.msra.mxu0 0
  %1054 = vmatprep.subr.bf16.mxu0 0
  %1055 = vmatpush1.bf16.msra.mxu0 0
  %1056 = vmatprep.subr.bf16.mxu0 0
  %1057 = vmatpush1.bf16.msra.mxu0 0
  %1058 = vmatprep.subr.bf16.mxu0 0
  %1059 = vmatpush1.bf16.msra.mxu0 0
  %1060 = vmatprep.subr.bf16.mxu0 0
  %1061 = vmatpush1.bf16.msra.mxu0 0
  %1062 = vmatprep.subr.bf16.mxu0 0
  %1063 = vmatpush1.bf16.msra.mxu0 0
  %1064 = vmatprep.subr.bf16.mxu0 0
  %1065 = vmatpush1.bf16.msra.mxu0 0
  %1066 = vmatprep.subr.bf16.mxu0 0
  %1067 = vmatpush1.bf16.msra.mxu0 0
  %1068 = vmatprep.subr.bf16.mxu0 0
  %1069 = vmatpush1.bf16.msra.mxu0 0
  %1070 = vmatprep.subr.bf16.mxu0 0
  %1071 = vmatpush1.bf16.msra.mxu0 0
  %1072 = vmatprep.mubr.bf16.mxu0 0
  %1073 = vmatmul.mubr.bf16.gmra.mrb[0].mxu0 %v1038
  %v1074 = vpop.f32.mrb[0].mxu0
  %v1075 = vadd.f32 %v935, %v1074
  %v1076 = vpop.f32.mrb[0].mxu0
  %v1077 = vpop.f32.mrb[0].mxu0
  %v1078 = vpop.f32.mrb[0].mxu0
  %1079 = vdwg.mxu0
  %v1080 = vxor.u32 %v1075, 2147483648
  %v1081 = vmul.f32 %v1080, 1.442695
  %v1082 = vpow.pop %v1081
  %v1083 = vadd.f32 %v1082, 1.0
  %v1084 = vrcp.pop %v1083
  %v1085 = vmul.f32 1.0, %v1084
  %v1086 = vmul.f32 %v1085, 2.0
  %v1087 = vsub.f32 %v1086, 1.0
  %v1088 = vmul.f32 %v1085, %v1009
  %1090 = vrot.lane.b32.xlu0 %v1087, 64
  %v1091 = vpop.permute.xlu0 %1090
  %v1093 = vmul.f32 %v1085, %v1091
  %1095 = vrot.lane.b32.xlu0 %v1093, 32
  %v1096 = vpop.permute.xlu0 %1095
  %v1098 = vadd.f32 %v1088, %v1096
  %v1099 = vtanh.pop %v1098
  %1101 = vrot.lane.b32.xlu0 %v1099, 64
  %v1102 = vpop.permute.xlu0 %1101
  %v1104 = vmul.f32 %v1085, %v1102
  %v1105 = vmul.f32 %v1104, %v1022
  %1107 = vrot.lane.b32.xlu0 %v1105, 32
  %v1108 = vpop.permute.xlu0 %1107
  %v1110 = vsel %vm193, %v1108, 0.0
  %1111 = vadd.xlane.f32.xlu0 %v1110
  %v1112 = vpop.xlane.xlu0 %1111
  %v1113 = vadd.f32 %v1112, %v1019
  %v1114 = vpack.c.bf16 %v1104, %v1104
  %1116 = vrot.lane.b32.xlu0 %v1114, 32
  %v1117 = vpop.permute.xlu0 %1116
  %v1119 = vsel %vm193, %v1117, 0
  %1121 = vmatprep.subr.bf16.mxu0 0
  %1122 = vmatpush1.bf16.msra.mxu0 %v944
  %1123 = vmatprep.subr.bf16.mxu0 0
  %1124 = vmatpush1.bf16.msra.mxu0 %v945
  %1125 = vmatprep.subr.bf16.mxu0 0
  %1126 = vmatpush1.bf16.msra.mxu0 0
  %1127 = vmatprep.subr.bf16.mxu0 0
  %1128 = vmatpush1.bf16.msra.mxu0 0
  %1129 = vmatprep.subr.bf16.mxu0 0
  %1130 = vmatpush1.bf16.msra.mxu0 0
  %1131 = vmatprep.subr.bf16.mxu0 0
  %1132 = vmatpush1.bf16.msra.mxu0 0
  %1133 = vmatprep.subr.bf16.mxu0 0
  %1134 = vmatpush1.bf16.msra.mxu0 0
  %1135 = vmatprep.subr.bf16.mxu0 0
  %1136 = vmatpush1.bf16.msra.mxu0 0
  %1137 = vmatprep.subr.bf16.mxu0 0
  %1138 = vmatpush1.bf16.msra.mxu0 0
  %1139 = vmatprep.subr.bf16.mxu0 0
  %1140 = vmatpush1.bf16.msra.mxu0 0
  %1141 = vmatprep.subr.bf16.mxu0 0
  %1142 = vmatpush1.bf16.msra.mxu0 0
  %1143 = vmatprep.subr.bf16.mxu0 0
  %1144 = vmatpush1.bf16.msra.mxu0 0
  %1145 = vmatprep.subr.bf16.mxu0 0
  %1146 = vmatpush1.bf16.msra.mxu0 0
  %1147 = vmatprep.subr.bf16.mxu0 0
  %1148 = vmatpush1.bf16.msra.mxu0 0
  %1149 = vmatprep.subr.bf16.mxu0 0
  %1150 = vmatpush1.bf16.msra.mxu0 0
  %1151 = vmatprep.subr.bf16.mxu0 0
  %1152 = vmatpush1.bf16.msra.mxu0 0
  %1153 = vmatprep.mubr.bf16.mxu0 0
  %1154 = vmatmul.mubr.bf16.gmra.mrb[0].mxu0 %v1119
  %v1155 = vpop.f32.mrb[0].mxu0
  %v1156 = vadd.f32 %v935, %v1155
  %v1157 = vpop.f32.mrb[0].mxu0
  %v1158 = vpop.f32.mrb[0].mxu0
  %v1159 = vpop.f32.mrb[0].mxu0
  %1160 = vdwg.mxu0
  %v1161 = vxor.u32 %v1156, 2147483648
  %v1162 = vmul.f32 %v1161, 1.442695
  %v1163 = vpow.pop %v1162
  %v1164 = vadd.f32 %v1163, 1.0
  %v1165 = vrcp.pop %v1164
  %v1166 = vmul.f32 1.0, %v1165
  %v1167 = vmul.f32 %v1166, 2.0
  %v1168 = vsub.f32 %v1167, 1.0
  %v1169 = vmul.f32 %v1166, %v1098
  %1171 = vrot.lane.b32.xlu0 %v1168, 64
  %v1172 = vpop.permute.xlu0 %1171
  %v1174 = vmul.f32 %v1166, %v1172
  %1176 = vrot.lane.b32.xlu0 %v1174, 32
  %v1177 = vpop.permute.xlu0 %1176
  %v1179 = vadd.f32 %v1169, %v1177
  %v1180 = vtanh.pop %v1179
  %1182 = vrot.lane.b32.xlu0 %v1180, 64
  %v1183 = vpop.permute.xlu0 %1182
  %v1185 = vmul.f32 %v1166, %v1183
  %v1186 = vmul.f32 %v1185, %v1022
  %1188 = vrot.lane.b32.xlu0 %v1186, 32
  %v1189 = vpop.permute.xlu0 %1188
  %v1191 = vsel %vm193, %v1189, 0.0
  %1192 = vadd.xlane.f32.xlu0 %v1191
  %v1193 = vpop.xlane.xlu0 %1192
  %v1194 = vadd.f32 %v1193, %v1019
  %v1195 = vpack.c.bf16 %v1185, %v1185
  %1197 = vrot.lane.b32.xlu0 %v1195, 32
  %v1198 = vpop.permute.xlu0 %1197
  %v1200 = vsel %vm193, %v1198, 0
  %1202 = vmatprep.subr.bf16.mxu0 0
  %1203 = vmatpush1.bf16.msra.mxu0 %v944
  %1204 = vmatprep.subr.bf16.mxu0 0
  %1205 = vmatpush1.bf16.msra.mxu0 %v945
  %1206 = vmatprep.subr.bf16.mxu0 0
  %1207 = vmatpush1.bf16.msra.mxu0 0
  %1208 = vmatprep.subr.bf16.mxu0 0
  %1209 = vmatpush1.bf16.msra.mxu0 0
  %1210 = vmatprep.subr.bf16.mxu0 0
  %1211 = vmatpush1.bf16.msra.mxu0 0
  %1212 = vmatprep.subr.bf16.mxu0 0
  %1213 = vmatpush1.bf16.msra.mxu0 0
  %1214 = vmatprep.subr.bf16.mxu0 0
  %1215 = vmatpush1.bf16.msra.mxu0 0
  %1216 = vmatprep.subr.bf16.mxu0 0
  %1217 = vmatpush1.bf16.msra.mxu0 0
  %1218 = vmatprep.subr.bf16.mxu0 0
  %1219 = vmatpush1.bf16.msra.mxu0 0
  %1220 = vmatprep.subr.bf16.mxu0 0
  %1221 = vmatpush1.bf16.msra.mxu0 0
  %1222 = vmatprep.subr.bf16.mxu0 0
  %1223 = vmatpush1.bf16.msra.mxu0 0
  %1224 = vmatprep.subr.bf16.mxu0 0
  %1225 = vmatpush1.bf16.msra.mxu0 0
  %1226 = vmatprep.subr.bf16.mxu0 0
  %1227 = vmatpush1.bf16.msra.mxu0 0
  %1228 = vmatprep.subr.bf16.mxu0 0
  %1229 = vmatpush1.bf16.msra.mxu0 0
  %1230 = vmatprep.subr.bf16.mxu0 0
  %1231 = vmatpush1.bf16.msra.mxu0 0
  %1232 = vmatprep.subr.bf16.mxu0 0
  %1233 = vmatpush1.bf16.msra.mxu0 0
  %1234 = vmatprep.mubr.bf16.mxu0 0
  %1235 = vmatmul.mubr.bf16.gmra.mrb[0].mxu0 %v1200
  %v1236 = vpop.f32.mrb[0].mxu0
  %v1237 = vadd.f32 %v935, %v1236
  %v1238 = vpop.f32.mrb[0].mxu0
  %v1239 = vpop.f32.mrb[0].mxu0
  %v1240 = vpop.f32.mrb[0].mxu0
  %1241 = vdwg.mxu0
  %v1242 = vxor.u32 %v1237, 2147483648
  %v1243 = vmul.f32 %v1242, 1.442695
  %v1244 = vpow.pop %v1243
  %v1245 = vadd.f32 %v1244, 1.0
  %v1246 = vrcp.pop %v1245
  %v1247 = vmul.f32 1.0, %v1246
  %v1248 = vmul.f32 %v1247, 2.0
  %v1249 = vsub.f32 %v1248, 1.0
  %v1250 = vmul.f32 %v1247, %v1179
  %1252 = vrot.lane.b32.xlu0 %v1249, 64
  %v1253 = vpop.permute.xlu0 %1252
  %v1255 = vmul.f32 %v1247, %v1253
  %1257 = vrot.lane.b32.xlu0 %v1255, 32
  %v1258 = vpop.permute.xlu0 %1257
  %v1260 = vadd.f32 %v1250, %v1258
  %v1261 = vtanh.pop %v1260
  %1263 = vrot.lane.b32.xlu0 %v1261, 64
  %v1264 = vpop.permute.xlu0 %1263
  %v1266 = vmul.f32 %v1247, %v1264
  %v1267 = vmul.f32 %v1266, %v1022
  %1269 = vrot.lane.b32.xlu0 %v1267, 32
  %v1270 = vpop.permute.xlu0 %1269
  %v1272 = vsel %vm193, %v1270, 0.0
  %1273 = vadd.xlane.f32.xlu0 %v1272
  %v1274 = vpop.xlane.xlu0 %1273
  %v1275 = vadd.f32 %v1274, %v1019
  %v1276 = vpack.c.bf16 %v1266, %v1266
  %1278 = vrot.lane.b32.xlu0 %v1276, 32
  %v1279 = vpop.permute.xlu0 %1278
  %v1281 = vsel %vm193, %v1279, 0
  %1283 = vmatprep.subr.bf16.mxu0 0
  %1284 = vmatpush1.bf16.msra.mxu0 %v944
  %1285 = vmatprep.subr.bf16.mxu0 0
  %1286 = vmatpush1.bf16.msra.mxu0 %v945
  %1287 = vmatprep.subr.bf16.mxu0 0
  %1288 = vmatpush1.bf16.msra.mxu0 0
  %1289 = vmatprep.subr.bf16.mxu0 0
  %1290 = vmatpush1.bf16.msra.mxu0 0
  %1291 = vmatprep.subr.bf16.mxu0 0
  %1292 = vmatpush1.bf16.msra.mxu0 0
  %1293 = vmatprep.subr.bf16.mxu0 0
  %1294 = vmatpush1.bf16.msra.mxu0 0
  %1295 = vmatprep.subr.bf16.mxu0 0
  %1296 = vmatpush1.bf16.msra.mxu0 0
  %1297 = vmatprep.subr.bf16.mxu0 0
  %1298 = vmatpush1.bf16.msra.mxu0 0
  %1299 = vmatprep.subr.bf16.mxu0 0
  %1300 = vmatpush1.bf16.msra.mxu0 0
  %1301 = vmatprep.subr.bf16.mxu0 0
  %1302 = vmatpush1.bf16.msra.mxu0 0
  %1303 = vmatprep.subr.bf16.mxu0 0
  %1304 = vmatpush1.bf16.msra.mxu0 0
  %1305 = vmatprep.subr.bf16.mxu0 0
  %1306 = vmatpush1.bf16.msra.mxu0 0
  %1307 = vmatprep.subr.bf16.mxu0 0
  %1308 = vmatpush1.bf16.msra.mxu0 0
  %1309 = vmatprep.subr.bf16.mxu0 0
  %1310 = vmatpush1.bf16.msra.mxu0 0
  %1311 = vmatprep.subr.bf16.mxu0 0
  %1312 = vmatpush1.bf16.msra.mxu0 0
  %1313 = vmatprep.subr.bf16.mxu0 0
  %1314 = vmatpush1.bf16.msra.mxu0 0
  %1315 = vmatprep.mubr.bf16.mxu0 0
  %1316 = vmatmul.mubr.bf16.gmra.mrb[0].mxu0 %v1281
  %v1317 = vpop.f32.mrb[0].mxu0
  %v1318 = vadd.f32 %v935, %v1317
  %v1319 = vpop.f32.mrb[0].mxu0
  %v1320 = vpop.f32.mrb[0].mxu0
  %v1321 = vpop.f32.mrb[0].mxu0
  %1322 = vdwg.mxu0
  %v1323 = vxor.u32 %v1318, 2147483648
  %v1324 = vmul.f32 %v1323, 1.442695
  %v1325 = vpow.pop %v1324
  %v1326 = vadd.f32 %v1325, 1.0
  %v1327 = vrcp.pop %v1326
  %v1328 = vmul.f32 1.0, %v1327
  %v1329 = vmul.f32 %v1328, 2.0
  %v1330 = vsub.f32 %v1329, 1.0
  %v1331 = vmul.f32 %v1328, %v1260
  %1333 = vrot.lane.b32.xlu0 %v1330, 64
  %v1334 = vpop.permute.xlu0 %1333
  %v1336 = vmul.f32 %v1328, %v1334
  %1338 = vrot.lane.b32.xlu0 %v1336, 32
  %v1339 = vpop.permute.xlu0 %1338
  %v1341 = vadd.f32 %v1331, %v1339
  %v1342 = vtanh.pop %v1341
  %1344 = vrot.lane.b32.xlu0 %v1342, 64
  %v1345 = vpop.permute.xlu0 %1344
  %v1347 = vmul.f32 %v1328, %v1345
  %v1348 = vmul.f32 %v1347, %v1022
  %1350 = vrot.lane.b32.xlu0 %v1348, 32
  %v1351 = vpop.permute.xlu0 %1350
  %v1353 = vsel %vm193, %v1351, 0.0
  %1354 = vadd.xlane.f32.xlu0 %v1353
  %v1355 = vpop.xlane.xlu0 %1354
  %v1356 = vadd.f32 %v1355, %v1019
  %v1357 = vpack.c.bf16 %v1347, %v1347
  %1359 = vrot.lane.b32.xlu0 %v1357, 32
  %v1360 = vpop.permute.xlu0 %1359
  %v1362 = vsel %vm193, %v1360, 0
  %1364 = vmatprep.subr.bf16.mxu0 0
  %1365 = vmatpush1.bf16.msra.mxu0 %v944
  %1366 = vmatprep.subr.bf16.mxu0 0
  %1367 = vmatpush1.bf16.msra.mxu0 %v945
  %1368 = vmatprep.subr.bf16.mxu0 0
  %1369 = vmatpush1.bf16.msra.mxu0 0
  %1370 = vmatprep.subr.bf16.mxu0 0
  %1371 = vmatpush1.bf16.msra.mxu0 0
  %1372 = vmatprep.subr.bf16.mxu0 0
  %1373 = vmatpush1.bf16.msra.mxu0 0
  %1374 = vmatprep.subr.bf16.mxu0 0
  %1375 = vmatpush1.bf16.msra.mxu0 0
  %1376 = vmatprep.subr.bf16.mxu0 0
  %1377 = vmatpush1.bf16.msra.mxu0 0
  %1378 = vmatprep.subr.bf16.mxu0 0
  %1379 = vmatpush1.bf16.msra.mxu0 0
  %1380 = vmatprep.subr.bf16.mxu0 0
  %1381 = vmatpush1.bf16.msra.mxu0 0
  %1382 = vmatprep.subr.bf16.mxu0 0
  %1383 = vmatpush1.bf16.msra.mxu0 0
  %1384 = vmatprep.subr.bf16.mxu0 0
  %1385 = vmatpush1.bf16.msra.mxu0 0
  %1386 = vmatprep.subr.bf16.mxu0 0
  %1387 = vmatpush1.bf16.msra.mxu0 0
  %1388 = vmatprep.subr.bf16.mxu0 0
  %1389 = vmatpush1.bf16.msra.mxu0 0
  %1390 = vmatprep.subr.bf16.mxu0 0
  %1391 = vmatpush1.bf16.msra.mxu0 0
  %1392 = vmatprep.subr.bf16.mxu0 0
  %1393 = vmatpush1.bf16.msra.mxu0 0
  %1394 = vmatprep.subr.bf16.mxu0 0
  %1395 = vmatpush1.bf16.msra.mxu0 0
  %1396 = vmatprep.mubr.bf16.mxu0 0
  %1397 = vmatmul.mubr.bf16.gmra.mrb[0].mxu0 %v1362
  %v1398 = vpop.f32.mrb[0].mxu0
  %v1399 = vadd.f32 %v935, %v1398
  %v1400 = vpop.f32.mrb[0].mxu0
  %v1401 = vpop.f32.mrb[0].mxu0
  %v1402 = vpop.f32.mrb[0].mxu0
  %1403 = vdwg.mxu0
  %v1404 = vxor.u32 %v1399, 2147483648
  %v1405 = vmul.f32 %v1404, 1.442695
  %v1406 = vpow.pop %v1405
  %v1407 = vadd.f32 %v1406, 1.0
  %v1408 = vrcp.pop %v1407
  %v1409 = vmul.f32 1.0, %v1408
  %v1410 = vmul.f32 %v1409, 2.0
  %v1411 = vsub.f32 %v1410, 1.0
  %v1412 = vmul.f32 %v1409, %v1341
  %1414 = vrot.lane.b32.xlu0 %v1411, 64
  %v1415 = vpop.permute.xlu0 %1414
  %v1417 = vmul.f32 %v1409, %v1415
  %1419 = vrot.lane.b32.xlu0 %v1417, 32
  %v1420 = vpop.permute.xlu0 %1419
  %v1422 = vadd.f32 %v1412, %v1420
  %v1423 = vtanh.pop %v1422
  %1425 = vrot.lane.b32.xlu0 %v1423, 64
  %v1426 = vpop.permute.xlu0 %1425
  %v1428 = vmul.f32 %v1409, %v1426
  %v1429 = vmul.f32 %v1428, %v1022
  %1431 = vrot.lane.b32.xlu0 %v1429, 32
  %v1432 = vpop.permute.xlu0 %1431
  %v1434 = vsel %vm193, %v1432, 0.0
  %1435 = vadd.xlane.f32.xlu0 %v1434
  %v1436 = vpop.xlane.xlu0 %1435
  %v1437 = vadd.f32 %v1436, %v1019
  %v1438 = vpack.c.bf16 %v1428, %v1428
  %1440 = vrot.lane.b32.xlu0 %v1438, 32
  %v1441 = vpop.permute.xlu0 %1440
  %v1443 = vsel %vm193, %v1441, 0
  %1445 = vmatprep.subr.bf16.mxu0 0
  %1446 = vmatpush1.bf16.msra.mxu0 %v944
  %1447 = vmatprep.subr.bf16.mxu0 0
  %1448 = vmatpush1.bf16.msra.mxu0 %v945
  %1449 = vmatprep.subr.bf16.mxu0 0
  %1450 = vmatpush1.bf16.msra.mxu0 0
  %1451 = vmatprep.subr.bf16.mxu0 0
  %1452 = vmatpush1.bf16.msra.mxu0 0
  %1453 = vmatprep.subr.bf16.mxu0 0
  %1454 = vmatpush1.bf16.msra.mxu0 0
  %1455 = vmatprep.subr.bf16.mxu0 0
  %1456 = vmatpush1.bf16.msra.mxu0 0
  %1457 = vmatprep.subr.bf16.mxu0 0
  %1458 = vmatpush1.bf16.msra.mxu0 0
  %1459 = vmatprep.subr.bf16.mxu0 0
  %1460 = vmatpush1.bf16.msra.mxu0 0
  %1461 = vmatprep.subr.bf16.mxu0 0
  %1462 = vmatpush1.bf16.msra.mxu0 0
  %1463 = vmatprep.subr.bf16.mxu0 0
  %1464 = vmatpush1.bf16.msra.mxu0 0
  %1465 = vmatprep.subr.bf16.mxu0 0
  %1466 = vmatpush1.bf16.msra.mxu0 0
  %1467 = vmatprep.subr.bf16.mxu0 0
  %1468 = vmatpush1.bf16.msra.mxu0 0
  %1469 = vmatprep.subr.bf16.mxu0 0
  %1470 = vmatpush1.bf16.msra.mxu0 0
  %1471 = vmatprep.subr.bf16.mxu0 0
  %1472 = vmatpush1.bf16.msra.mxu0 0
  %1473 = vmatprep.subr.bf16.mxu0 0
  %1474 = vmatpush1.bf16.msra.mxu0 0
  %1475 = vmatprep.subr.bf16.mxu0 0
  %1476 = vmatpush1.bf16.msra.mxu0 0
  %1477 = vmatprep.mubr.bf16.mxu0 0
  %1478 = vmatmul.mubr.bf16.gmra.mrb[0].mxu0 %v1443
  %v1479 = vpop.f32.mrb[0].mxu0
  %v1480 = vadd.f32 %v935, %v1479
  %v1481 = vpop.f32.mrb[0].mxu0
  %v1482 = vpop.f32.mrb[0].mxu0
  %v1483 = vpop.f32.mrb[0].mxu0
  %1484 = vdwg.mxu0
  %v1485 = vxor.u32 %v1480, 2147483648
  %v1486 = vmul.f32 %v1485, 1.442695
  %v1487 = vpow.pop %v1486
  %v1488 = vadd.f32 %v1487, 1.0
  %v1489 = vrcp.pop %v1488
  %v1490 = vmul.f32 1.0, %v1489
  %v1491 = vmul.f32 %v1490, 2.0
  %v1492 = vsub.f32 %v1491, 1.0
  %v1493 = vmul.f32 %v1490, %v1422
  %1495 = vrot.lane.b32.xlu0 %v1492, 64
  %v1496 = vpop.permute.xlu0 %1495
  %v1498 = vmul.f32 %v1490, %v1496
  %1500 = vrot.lane.b32.xlu0 %v1498, 32
  %v1501 = vpop.permute.xlu0 %1500
  %v1503 = vadd.f32 %v1493, %v1501
  %v1504 = vtanh.pop %v1503
  %1506 = vrot.lane.b32.xlu0 %v1504, 64
  %v1507 = vpop.permute.xlu0 %1506
  %v1509 = vmul.f32 %v1490, %v1507
  %v1510 = vmul.f32 %v1509, %v1022
  %1512 = vrot.lane.b32.xlu0 %v1510, 32
  %v1513 = vpop.permute.xlu0 %1512
  %v1515 = vsel %vm193, %v1513, 0.0
  %1516 = vadd.xlane.f32.xlu0 %v1515
  %v1517 = vpop.xlane.xlu0 %1516
  %v1518 = vadd.f32 %v1517, %v1019
  %v1519 = vpack.c.bf16 %v1509, %v1509
  %1521 = vrot.lane.b32.xlu0 %v1519, 32
  %v1522 = vpop.permute.xlu0 %1521
  %v1524 = vsel %vm193, %v1522, 0
  %1526 = vmatprep.subr.bf16.mxu0 0
  %1527 = vmatpush1.bf16.msra.mxu0 %v944
  %1528 = vmatprep.subr.bf16.mxu0 0
  %1529 = vmatpush1.bf16.msra.mxu0 %v945
  %1530 = vmatprep.subr.bf16.mxu0 0
  %1531 = vmatpush1.bf16.msra.mxu0 0
  %1532 = vmatprep.subr.bf16.mxu0 0
  %1533 = vmatpush1.bf16.msra.mxu0 0
  %1534 = vmatprep.subr.bf16.mxu0 0
  %1535 = vmatpush1.bf16.msra.mxu0 0
  %1536 = vmatprep.subr.bf16.mxu0 0
  %1537 = vmatpush1.bf16.msra.mxu0 0
  %1538 = vmatprep.subr.bf16.mxu0 0
  %1539 = vmatpush1.bf16.msra.mxu0 0
  %1540 = vmatprep.subr.bf16.mxu0 0
  %1541 = vmatpush1.bf16.msra.mxu0 0
  %1542 = vmatprep.subr.bf16.mxu0 0
  %1543 = vmatpush1.bf16.msra.mxu0 0
  %1544 = vmatprep.subr.bf16.mxu0 0
  %1545 = vmatpush1.bf16.msra.mxu0 0
  %1546 = vmatprep.subr.bf16.mxu0 0
  %1547 = vmatpush1.bf16.msra.mxu0 0
  %1548 = vmatprep.subr.bf16.mxu0 0
  %1549 = vmatpush1.bf16.msra.mxu0 0
  %1550 = vmatprep.subr.bf16.mxu0 0
  %1551 = vmatpush1.bf16.msra.mxu0 0
  %1552 = vmatprep.subr.bf16.mxu0 0
  %1553 = vmatpush1.bf16.msra.mxu0 0
  %1554 = vmatprep.subr.bf16.mxu0 0
  %1555 = vmatpush1.bf16.msra.mxu0 0
  %1556 = vmatprep.subr.bf16.mxu0 0
  %1557 = vmatpush1.bf16.msra.mxu0 0
  %1558 = vmatprep.mubr.bf16.mxu0 0
  %1559 = vmatmul.mubr.bf16.gmra.mrb[0].mxu0 %v1524
  %v1560 = vpop.f32.mrb[0].mxu0
  %v1561 = vadd.f32 %v935, %v1560
  %v1562 = vpop.f32.mrb[0].mxu0
  %v1563 = vpop.f32.mrb[0].mxu0
  %v1564 = vpop.f32.mrb[0].mxu0
  %1565 = vdwg.mxu0
  %v1566 = vxor.u32 %v1561, 2147483648
  %v1567 = vmul.f32 %v1566, 1.442695
  %v1568 = vpow.pop %v1567
  %v1569 = vadd.f32 %v1568, 1.0
  %v1570 = vrcp.pop %v1569
  %v1571 = vmul.f32 1.0, %v1570
  %v1572 = vmul.f32 %v1571, 2.0
  %v1573 = vsub.f32 %v1572, 1.0
  %v1574 = vmul.f32 %v1571, %v1503
  %1576 = vrot.lane.b32.xlu0 %v1573, 64
  %v1577 = vpop.permute.xlu0 %1576
  %v1579 = vmul.f32 %v1571, %v1577
  %1581 = vrot.lane.b32.xlu0 %v1579, 32
  %v1582 = vpop.permute.xlu0 %1581
  %v1584 = vadd.f32 %v1574, %v1582
  %v1585 = vtanh.pop %v1584
  %1587 = vrot.lane.b32.xlu0 %v1585, 64
  %v1588 = vpop.permute.xlu0 %1587
  %v1590 = vmul.f32 %v1571, %v1588
  %v1591 = vmul.f32 %v1590, %v1022
  %1593 = vrot.lane.b32.xlu0 %v1591, 32
  %v1594 = vpop.permute.xlu0 %1593
  %v1596 = vsel %vm193, %v1594, 0.0
  %1597 = vadd.xlane.f32.xlu0 %v1596
  %v1598 = vpop.xlane.xlu0 %1597
  %v1599 = vadd.f32 %v1598, %v1019
  %1601 = vrot.lane.b32.xlu0 %v1032, 96
  %v1602 = vpop.permute.xlu0 %1601
  %1605 = vrot.lane.b32.xlu0 %v1113, 97
  %v1606 = vpop.permute.xlu0 %1605
  %1609 = vrot.lane.b32.xlu0 %v1194, 98
  %v1610 = vpop.permute.xlu0 %1609
  %1613 = vrot.lane.b32.xlu0 %v1275, 99
  %v1614 = vpop.permute.xlu0 %1613
  %1617 = vrot.lane.b32.xlu0 %v1356, 100
  %v1618 = vpop.permute.xlu0 %1617
  %1621 = vrot.lane.b32.xlu0 %v1437, 101
  %v1622 = vpop.permute.xlu0 %1621
  %1625 = vrot.lane.b32.xlu0 %v1518, 102
  %v1626 = vpop.permute.xlu0 %1625
  %1629 = vrot.lane.b32.xlu0 %v1599, 103
  %v1630 = vpop.permute.xlu0 %1629
  %vm1632 = vcmask 7168
  %v1633 = vsel %vm1632, %v1602, %v1606
  %vm1634 = vcmask 15360
  %v1635 = vsel %vm1634, %v1633, %v1610
  %vm1636 = vcmask 23552
  %v1637 = vsel %vm1636, %v1635, %v1614
  %v1638 = vsel %vm47, %v1637, %v1618
  %vm1639 = vcmask 39936
  %v1640 = vsel %vm1639, %v1638, %v1622
  %vm1641 = vcmask 48128
  %v1642 = vsel %vm1641, %v1640, %v1626
  %vm1643 = vcmask 56320
  %v1644 = vsel %vm1643, %v1642, %v1630
  %1645 = vrot.lane.b32.xlu0 %v850, 8
  %v1646 = vpop.permute.xlu0 %1645
  %vm1648 = vcmask 64512
  %v1649 = vsel %vm1648, %v1644, %v1646
  %vm1650 = vcmask 195584
  %v1651 = vsel %vm1650, %v1649, 0.0
  %1652 = vst [vmem:[%s3] sm:$0xff] %v1651
  // Predicated region
  $region14: #{vrae_forward.1} parent=0 // pred_check
    _
  $region15: #{vrae_forward.1} parent=0 // pred_check_branch
    %1654 = sbr.rel (0) target = $region17
  $region16: #{vrae_forward.1} parent=0 // pred_region
    _
  $region17: #{vrae_forward.1} parent=0 // pred_fallthru
    _
  // Predicated region
  $region18: #{vrae_forward.1} parent=0 // pred_check
    _
  $region19: #{vrae_forward.1} parent=0 // pred_check_branch
    %1656 = sbr.rel (0) target = $region21
  $region20: #{vrae_forward.1} parent=0 // pred_region
    _
  $region21: #{vrae_forward.1} parent=0 // pred_fallthru
    _

</llo_original>
